<compile_context>
chip_gen: v7x
topology: tpu7x:2x2x1
jax: 0.10.0
libtpu: 0.0.40
codegen_flags: <defaults>
</compile_context>

<pallas_src>
import functools
import math

import jax
import jax.numpy as jnp
from jax.experimental import pallas as pl
from jax.experimental.pallas import tpu as pltpu


# ------------------------------ fused Pallas kernel ------------------------------ #

def _swin_msa_kernel(x_ref, w1_ref, b1_ref, bias_ref, w2_ref, b2_ref, o_ref, *,
                     num_heads, ws2):
    """Fused qkv projection -> windowed MSA -> output projection.

    x_ref   : (1, Ng, C)       bf16  window-ordered tokens for this (batch, group)
    w1_ref  : (C, 3C)          bf16  columns permuted to (qkv, head, e); q cols pre-scaled
    b1_ref  : (1, 3C)          f32
    bias_ref: (nWg, ws2, ws2)  f32   relative-position (+ shift-mask) bias
    w2_ref  : (C, C)           bf16
    b2_ref  : (1, C)           f32
    o_ref   : (1, Ng, C)
    """
    _, Ng, C = x_ref.shape
    e = C // num_heads
    nWg = Ng // ws2

    # qkv projection: bf16 operands, f32 accumulation on the MXU.
    y = (jnp.dot(x_ref[0], w1_ref[...], preferred_element_type=jnp.float32)
         + b1_ref[...]).astype(jnp.bfloat16)                        # (Ng, 3C)

    bias = bias_ref[...]                                            # (nWg, ws2, ws2)
    w2 = w2_ref[...]                                                # (C, C) bf16
    acc = jnp.zeros((Ng, C), jnp.float32)

    # TODO(synk): heads are a static unrolled loop (lane slices + leading-dim-only
    # reshapes + single-batch-dim dots, all known-good lowerings); a 2-batch-dim
    # dot_general over (head, window) would fold this but lowers less reliably.
    for h in range(num_heads):
        q = y[:, h * e:(h + 1) * e].reshape(nWg, ws2, e)
        k = y[:, C + h * e:C + (h + 1) * e].reshape(nWg, ws2, e)
        v = y[:, 2 * C + h * e:2 * C + (h + 1) * e].reshape(nWg, ws2, e)

        # scores; the 1/sqrt(head_dim) scale is already folded into the q weights.
        s = jnp.einsum("nqe,nke->nqk", q, k,
                       preferred_element_type=jnp.float32) + bias   # (nWg, ws2, ws2)

        # numerically-stable softmax in f32; the divide goes to the EUP slot.
        s = s - jnp.max(s, axis=-1, keepdims=True)
        p = jnp.exp(s)
        p = (p * pl.reciprocal(jnp.sum(p, axis=-1, keepdims=True), approx=True)
             ).astype(jnp.bfloat16)

        o = jnp.einsum("nqk,nke->nqe", p, v,
                       preferred_element_type=jnp.float32)          # (nWg, ws2, e)

        # Fold head-concat + output projection: out += o_h @ w2[h*e:(h+1)*e, :]
        # (no lane-offset concat epilogue, no output transpose).
        acc = acc + jnp.dot(o.reshape(Ng, e).astype(jnp.bfloat16),
                            w2[h * e:(h + 1) * e, :],
                            preferred_element_type=jnp.float32)

    o_ref[0] = (acc + b2_ref[...]).astype(o_ref.dtype)


# --------------------------------- bias / masks ---------------------------------- #

def relative_position_bias(pos_emb, ws):
    coords = jnp.stack(
        jnp.meshgrid(jnp.arange(ws), jnp.arange(ws), indexing="ij"), axis=-1
    ).reshape(-1, 2)                                              # (ws2, 2)
    rel = coords[None, :, :] - coords[:, None, :] + (ws - 1)       # (ws2, ws2, 2)
    return pos_emb[rel[:, :, 0], rel[:, :, 1]]                     # (ws2, ws2)


def shift_masks(ws, neg=-jnp.inf):
    ws2 = ws * ws
    m = ws * (ws // 2)
    row_mask = jnp.zeros((ws2, ws2), jnp.float32)
    row_mask = row_mask.at[ws2 - m:, : ws2 - m].set(neg)
    row_mask = row_mask.at[: ws2 - m, ws2 - m:].set(neg)
    # rearrange '(r w1) (c w2) -> (w1 r) (w2 c)'
    col_mask = row_mask.reshape(ws, ws, ws, ws).transpose(1, 0, 3, 2).reshape(ws2, ws2)
    return row_mask, col_mask


def window_bias(pos_emb, ws, Wh, Ww, shifted, neg=-1e9):
    # neg = large finite negative (robust; exp underflows to 0 after max-subtraction)
    ws2 = ws * ws
    rel = relative_position_bias(pos_emb, ws)
    bias = jnp.broadcast_to(rel, (Wh, Ww, ws2, ws2))
    if shifted:
        row_mask, col_mask = shift_masks(ws, neg)
        row_add = jnp.where((jnp.arange(Wh) == Wh - 1)[:, None, None, None],
                            row_mask[None, None], 0.0)
        col_add = jnp.where((jnp.arange(Ww) == Ww - 1)[None, :, None, None],
                            col_mask[None, None], 0.0)
        bias = bias + row_add + col_add
    return bias.reshape(Wh * Ww, ws2, ws2)


# ------------------------------ parameter plumbing -------------------------------- #

def permute_qkv_weights(w1, b1, nh, e, scale=1.0):
    """Permute linear1's output features to (qkv, head, e) order and fold the
    1/sqrt(head_dim) attention scale into the q columns (one-time transform;
    in a real model this is folded into parameter init)."""
    C = nh * e
    k_idx, h_idx, e_idx = jnp.meshgrid(
        jnp.arange(3), jnp.arange(nh), jnp.arange(e), indexing="ij")
    perm = ((e_idx * nh + h_idx) * 3 + k_idx).reshape(-1)
    w = w1.T[:, perm]
    b = b1[perm]
    col_scale = jnp.concatenate(
        [jnp.full((C,), scale, w.dtype), jnp.ones((2 * C,), w.dtype)])
    return w * col_scale[None, :], b * col_scale


def _pick_window_groups(batch, n_windows, ws2):
    """Second 'parallel' grid axis: when B is tiny (e.g. B == 1 inference) split the
    windows so both v7x TensorCores get work; otherwise keep one big step per batch
    element (amortizes the ~0.35 us/step fixed cost on single-TC v5e/v6e)."""
    if batch >= 2:
        return 1
    for g in (2, 4, 8):
        if n_windows % g == 0 and ((n_windows // g) * ws2) % 8 == 0:
            return g
    return 1


# ------------------------------- forward (Pallas) --------------------------------- #

def shifted_window_msa_forward(x, params, *, num_heads, window_size, shifted=True):
    B, N, C = x.shape
    H = W = int(round(math.sqrt(N)))
    assert H * W == N, "tokens must form a square spatial grid"
    ws, nh = window_size, num_heads
    assert H % ws == 0 and W % ws == 0 and C % nh == 0
    e = C // nh
    Wh, Ww = H // ws, W // ws
    nW, ws2 = Wh * Ww, ws * ws
    scale = 1.0 / math.sqrt(C / nh)

    # One-time weight prep: permute qkv columns, fold the scale, cast to bf16.
    w1p, b1p = permute_qkv_weights(params["w1"], params["b1"], nh, e, scale)
    w1p = w1p.astype(jnp.bfloat16)
    b1p = b1p.astype(jnp.float32).reshape(1, 3 * C)
    w2 = params["w2"].T.astype(jnp.bfloat16)
    b2 = params["b2"].astype(jnp.float32).reshape(1, C)

    bias = window_bias(params["pos_emb"], ws, Wh, Ww, shifted)     # (nW, ws2, ws2) f32

    # Cyclic shift + window gather on the *input* tokens (the per-token projections
    # commute with any token permutation, so this is equivalent and 3x cheaper than
    # relaying out the qkv activations).
    if shifted:
        sft = (-ws) // 2
        x = jnp.roll(x.reshape(B, H, W, C), shift=(sft, sft), axis=(1, 2)).reshape(B, N, C)
    # TODO(synk): this window gather/scatter relayout stays in XLA; expressing it via
    # per-window BlockSpec index_maps would reintroduce per-window grid steps.
    xw = x.reshape(B, Wh, ws, Ww, ws, C).transpose(0, 1, 3, 2, 4, 5)
    xw = xw.reshape(B, nW * ws2, C).astype(jnp.bfloat16)

    G = _pick_window_groups(B, nW, ws2)
    nWg = nW // G
    Ng = nWg * ws2

    out = pl.pallas_call(
        functools.partial(_swin_msa_kernel, num_heads=nh, ws2=ws2),
        out_shape=jax.ShapeDtypeStruct((B, N, C), x.dtype),
        grid=(B, G),
        in_specs=[
            pl.BlockSpec((1, Ng, C), lambda b, g: (b, g, 0)),
            pl.BlockSpec((C, 3 * C), lambda b, g: (0, 0)),        # resident weights
            pl.BlockSpec((1, 3 * C), lambda b, g: (0, 0)),
            pl.BlockSpec((nWg, ws2, ws2), lambda b, g: (g, 0, 0)),  # resident bias
            pl.BlockSpec((C, C), lambda b, g: (0, 0)),
            pl.BlockSpec((1, C), lambda b, g: (0, 0)),
        ],
        out_specs=pl.BlockSpec((1, Ng, C), lambda b, g: (b, g, 0)),
        compiler_params=pltpu.CompilerParams(
            dimension_semantics=("parallel", "parallel"),
            # Per-step footprint is small (weights + one token slab); 32 MiB is safely
            # under the physical limit on every generation (incl. v7x's 64 MiB VMEM).
            vmem_limit_bytes=32 * 1024 * 1024),
    )(xw, w1p, b1p, bias, w2, b2)

    # Scatter windows back onto the (shifted) spatial grid; channels already (H e).
    out = out.reshape(B, Wh, Ww, ws, ws, C).transpose(0, 1, 3, 2, 4, 5)
    return out.reshape(B, N, C)


# ------------------------------ pure-JAX reference -------------------------------- #

def reference_forward(x, params, *, num_heads, window_size, shifted=True):
    B, N, C = x.shape
    H = W = int(round(math.sqrt(N)))
    ws, nh = window_size, num_heads
    e = C // nh
    Wh, Ww = H // ws, W // ws
    ws2 = ws * ws
    h_dim = C / nh
    hp = jax.lax.Precision.HIGHEST

    y = jnp.dot(x, params["w1"].T, precision=hp) + params["b1"]
    y = y.reshape(B, H, W, C, 3)
    if shifted:
        s = (-ws) // 2
        y = jnp.roll(y, shift=(s, s), axis=(1, 2))
    y = y.reshape(B, Wh, ws, Ww, ws, e, nh, 3).transpose(0, 6, 1, 3, 2, 4, 5, 7)
    y = y.reshape(B, nh, Wh, Ww, ws2, e, 3)
    Q, K, V = y[..., 0], y[..., 1], y[..., 2]
    wei = jnp.einsum("bhxyqe,bhxyke->bhxyqk", Q, K, precision=hp) / math.sqrt(h_dim)
    wei = wei + relative_position_bias(params["pos_emb"], ws)
    if shifted:
        row_mask, col_mask = shift_masks(ws)
        wei = wei.at[:, :, -1, :].add(row_mask)
        wei = wei.at[:, :, :, -1].add(col_mask)
    wei = jax.nn.softmax(wei, axis=-1)
    out = jnp.einsum("bhxyqk,bhxyke->bhxyqe", wei, V, precision=hp)
    out = out.reshape(B, nh, Wh, Ww, ws, ws, e)
    out = out.transpose(0, 2, 4, 3, 5, 1, 6).reshape(B, H, W, nh * e)
    out = out.reshape(B, N, C)
    return jnp.dot(out, params["w2"].T, precision=hp) + params["b2"]


# ------------------------------------- main ---------------------------------------- #

if __name__ == "__main__":
    B, C, num_heads, window_size = 2, 32, 4, 4
    H = W = 8
    N = H * W  # 64 tokens

    key = jax.random.PRNGKey(0)
    kx, kw1, kb1, kw2, kb2, kp = jax.random.split(key, 6)
    x = jax.random.normal(kx, (B, N, C), jnp.float32)
    params = {
        "w1": jax.random.normal(kw1, (3 * C, C), jnp.float32) / math.sqrt(C),
        "b1": jax.random.normal(kb1, (3 * C,), jnp.float32) * 0.02,
        "w2": jax.random.normal(kw2, (C, C), jnp.float32) / math.sqrt(C),
        "b2": jax.random.normal(kb2, (C,), jnp.float32) * 0.02,
        "pos_emb": jax.random.normal(kp, (2 * window_size - 1, 2 * window_size - 1),
                                     jnp.float32),
    }

    out = shifted_window_msa_forward(
        x, params, num_heads=num_heads, window_size=window_size, shifted=True)
    out = jax.block_until_ready(out)

    ref = reference_forward(
        x, params, num_heads=num_heads, window_size=window_size, shifted=True)

    assert out.shape == (B, N, C)
    assert bool(jnp.all(jnp.isfinite(out)))
    # bf16 MXU operands (per perf review) set the error floor vs. the f32-HIGHEST
    # reference; accumulation stays f32, so deviations are ~1e-2-level absolute.
    max_err = float(jnp.max(jnp.abs(out - ref)))
    assert bool(jnp.allclose(out, ref, rtol=5e-2, atol=1e-1)), max_err
    print("KERNEL_OK")
</pallas_src>

<mosaic_0001>
module attributes {stable_mosaic.version = 11 : i64} {
  func.func @_swin_msa_kernel(%arg0: i32, %arg1: i32, %arg2: memref<1x64x32xbf16, #tpu.memory_space<vmem>>, %arg3: memref<32x96xbf16, #tpu.memory_space<vmem>>, %arg4: memref<1x96xf32, #tpu.memory_space<vmem>>, %arg5: memref<4x16x16xf32, #tpu.memory_space<vmem>>, %arg6: memref<32x32xbf16, #tpu.memory_space<vmem>>, %arg7: memref<1x32xf32, #tpu.memory_space<vmem>>, %arg8: memref<1x64x32xf32, #tpu.memory_space<vmem>>) attributes {dimension_semantics = [#tpu.dimension_semantics<parallel>, #tpu.dimension_semantics<parallel>], iteration_bounds = array<i64: 2, 1>, scalar_prefetch = 0 : i64, scratch_operands = 0 : i64, tpu.core_type = #tpu.core_type<tc>, window_params = [{transform_indices = @transform_0, window_bounds = array<i64: 1, 64, 32>}, {pipeline_mode = #tpu.pipeline_mode<synchronous>, transform_indices = @transform_1, window_bounds = array<i64: 32, 96>}, {pipeline_mode = #tpu.pipeline_mode<synchronous>, transform_indices = @transform_2, window_bounds = array<i64: 1, 96>}, {transform_indices = @transform_3, window_bounds = array<i64: 4, 16, 16>}, {pipeline_mode = #tpu.pipeline_mode<synchronous>, transform_indices = @transform_4, window_bounds = array<i64: 32, 32>}, {pipeline_mode = #tpu.pipeline_mode<synchronous>, transform_indices = @transform_5, window_bounds = array<i64: 1, 32>}, {transform_indices = @transform_6, window_bounds = array<i64: 1, 64, 32>}]} {
    %c0 = arith.constant 0 : index
    %c0_0 = arith.constant 0 : index
    %c0_1 = arith.constant 0 : index
    %0 = vector.load %arg2[%c0, %c0_0, %c0_1] : memref<1x64x32xbf16, #tpu.memory_space<vmem>>, vector<1x64x32xbf16>
    %1 = vector.shape_cast %0 : vector<1x64x32xbf16> to vector<64x32xbf16>
    %c0_2 = arith.constant 0 : index
    %c0_3 = arith.constant 0 : index
    %2 = vector.load %arg3[%c0_2, %c0_3] : memref<32x96xbf16, #tpu.memory_space<vmem>>, vector<32x96xbf16>
    %cst = arith.constant dense<0.000000e+00> : vector<64x96xf32>
    %3 = tpu.matmul %1, %2, %cst {dimension_numbers = #tpu.dot_dimension_numbers<[1], [0], [0], [1], [0, 0, 1, 1], [], []>} : vector<64x32xbf16>, vector<32x96xbf16>, vector<64x96xf32> -> vector<64x96xf32>
    %c0_4 = arith.constant 0 : index
    %c0_5 = arith.constant 0 : index
    %4 = vector.load %arg4[%c0_4, %c0_5] : memref<1x96xf32, #tpu.memory_space<vmem>>, vector<1x96xf32>
    %5 = vector.broadcast %4 : vector<1x96xf32> to vector<64x96xf32>
    %6 = arith.addf %3, %5 : vector<64x96xf32>
    %7 = arith.truncf %6 : vector<64x96xf32> to vector<64x96xbf16>
    %c0_6 = arith.constant 0 : index
    %c0_7 = arith.constant 0 : index
    %c0_8 = arith.constant 0 : index
    %8 = vector.load %arg5[%c0_6, %c0_7, %c0_8] : memref<4x16x16xf32, #tpu.memory_space<vmem>>, vector<4x16x16xf32>
    %c0_9 = arith.constant 0 : index
    %c0_10 = arith.constant 0 : index
    %9 = vector.load %arg6[%c0_9, %c0_10] : memref<32x32xbf16, #tpu.memory_space<vmem>>, vector<32x32xbf16>
    %cst_11 = arith.constant 0.000000e+00 : f32
    %10 = vector.broadcast %cst_11 : f32 to vector<64x32xf32>
    %11 = vector.extract_strided_slice %7 {offsets = [0, 0], sizes = [64, 8], strides = [1, 1]} : vector<64x96xbf16> to vector<64x8xbf16>
    %12 = vector.shape_cast %11 : vector<64x8xbf16> to vector<4x16x8xbf16>
    %13 = vector.extract_strided_slice %7 {offsets = [0, 32], sizes = [64, 8], strides = [1, 1]} : vector<64x96xbf16> to vector<64x8xbf16>
    %14 = vector.shape_cast %13 : vector<64x8xbf16> to vector<4x16x8xbf16>
    %15 = vector.extract_strided_slice %7 {offsets = [0, 64], sizes = [64, 8], strides = [1, 1]} : vector<64x96xbf16> to vector<64x8xbf16>
    %16 = vector.shape_cast %15 : vector<64x8xbf16> to vector<4x16x8xbf16>
    "tpu.trace_start"() <{level = 10 : i32, message = "nqe,nke->nqk"}> : () -> ()
    %cst_12 = arith.constant dense<0.000000e+00> : vector<4x16x16xf32>
    %17 = tpu.matmul %12, %14, %cst_12 {dimension_numbers = #tpu.dot_dimension_numbers<[2], [2], [1], [1], [0, 0, 0, 1, 1, 1], [0], [0]>} : vector<4x16x8xbf16>, vector<4x16x8xbf16>, vector<4x16x16xf32> -> vector<4x16x16xf32>
    "tpu.trace_stop"() : () -> ()
    %18 = arith.addf %17, %8 : vector<4x16x16xf32>
    %cst_13 = arith.constant dense<0xFF800000> : vector<4x16xf32>
    %19 = vector.multi_reduction <maximumf>, %18, %cst_13 [2] : vector<4x16x16xf32> to vector<4x16xf32>
    %20 = vector.shape_cast %19 : vector<4x16xf32> to vector<4x16x1xf32>
    %21 = vector.broadcast %20 : vector<4x16x1xf32> to vector<4x16x16xf32>
    %22 = arith.subf %18, %21 : vector<4x16x16xf32>
    %23 = math.exp %22 : vector<4x16x16xf32>
    %cst_14 = arith.constant dense<0.000000e+00> : vector<4x16xf32>
    %24 = vector.multi_reduction <add>, %23, %cst_14 [2] : vector<4x16x16xf32> to vector<4x16xf32>
    %25 = vector.shape_cast %24 : vector<4x16xf32> to vector<4x16x1xf32>
    %26 = tpu.reciprocal %25 {approx = true} : vector<4x16x1xf32> -> vector<4x16x1xf32>
    %27 = vector.broadcast %26 : vector<4x16x1xf32> to vector<4x16x16xf32>
    %28 = arith.mulf %23, %27 : vector<4x16x16xf32>
    %29 = arith.truncf %28 : vector<4x16x16xf32> to vector<4x16x16xbf16>
    "tpu.trace_start"() <{level = 10 : i32, message = "nqk,nke->nqe"}> : () -> ()
    %cst_15 = arith.constant dense<0.000000e+00> : vector<4x16x8xf32>
    %30 = tpu.matmul %29, %16, %cst_15 {dimension_numbers = #tpu.dot_dimension_numbers<[2], [1], [1], [2], [0, 0, 0, 1, 1, 2], [0], [0]>} : vector<4x16x16xbf16>, vector<4x16x8xbf16>, vector<4x16x8xf32> -> vector<4x16x8xf32>
    "tpu.trace_stop"() : () -> ()
    %31 = vector.shape_cast %30 : vector<4x16x8xf32> to vector<64x8xf32>
    %32 = arith.truncf %31 : vector<64x8xf32> to vector<64x8xbf16>
    %33 = vector.extract_strided_slice %9 {offsets = [0, 0], sizes = [8, 32], strides = [1, 1]} : vector<32x32xbf16> to vector<8x32xbf16>
    %cst_16 = arith.constant dense<0.000000e+00> : vector<64x32xf32>
    %34 = tpu.matmul %32, %33, %cst_16 {dimension_numbers = #tpu.dot_dimension_numbers<[1], [0], [0], [1], [0, 0, 1, 1], [], []>} : vector<64x8xbf16>, vector<8x32xbf16>, vector<64x32xf32> -> vector<64x32xf32>
    %35 = arith.addf %10, %34 : vector<64x32xf32>
    %36 = vector.extract_strided_slice %7 {offsets = [0, 8], sizes = [64, 8], strides = [1, 1]} : vector<64x96xbf16> to vector<64x8xbf16>
    %37 = vector.shape_cast %36 : vector<64x8xbf16> to vector<4x16x8xbf16>
    %38 = vector.extract_strided_slice %7 {offsets = [0, 40], sizes = [64, 8], strides = [1, 1]} : vector<64x96xbf16> to vector<64x8xbf16>
    %39 = vector.shape_cast %38 : vector<64x8xbf16> to vector<4x16x8xbf16>
    %40 = vector.extract_strided_slice %7 {offsets = [0, 72], sizes = [64, 8], strides = [1, 1]} : vector<64x96xbf16> to vector<64x8xbf16>
    %41 = vector.shape_cast %40 : vector<64x8xbf16> to vector<4x16x8xbf16>
    "tpu.trace_start"() <{level = 10 : i32, message = "nqe,nke->nqk"}> : () -> ()
    %cst_17 = arith.constant dense<0.000000e+00> : vector<4x16x16xf32>
    %42 = tpu.matmul %37, %39, %cst_17 {dimension_numbers = #tpu.dot_dimension_numbers<[2], [2], [1], [1], [0, 0, 0, 1, 1, 1], [0], [0]>} : vector<4x16x8xbf16>, vector<4x16x8xbf16>, vector<4x16x16xf32> -> vector<4x16x16xf32>
    "tpu.trace_stop"() : () -> ()
    %43 = arith.addf %42, %8 : vector<4x16x16xf32>
    %cst_18 = arith.constant dense<0xFF800000> : vector<4x16xf32>
    %44 = vector.multi_reduction <maximumf>, %43, %cst_18 [2] : vector<4x16x16xf32> to vector<4x16xf32>
    %45 = vector.shape_cast %44 : vector<4x16xf32> to vector<4x16x1xf32>
    %46 = vector.broadcast %45 : vector<4x16x1xf32> to vector<4x16x16xf32>
    %47 = arith.subf %43, %46 : vector<4x16x16xf32>
    %48 = math.exp %47 : vector<4x16x16xf32>
    %cst_19 = arith.constant dense<0.000000e+00> : vector<4x16xf32>
    %49 = vector.multi_reduction <add>, %48, %cst_19 [2] : vector<4x16x16xf32> to vector<4x16xf32>
    %50 = vector.shape_cast %49 : vector<4x16xf32> to vector<4x16x1xf32>
    %51 = tpu.reciprocal %50 {approx = true} : vector<4x16x1xf32> -> vector<4x16x1xf32>
    %52 = vector.broadcast %51 : vector<4x16x1xf32> to vector<4x16x16xf32>
    %53 = arith.mulf %48, %52 : vector<4x16x16xf32>
    %54 = arith.truncf %53 : vector<4x16x16xf32> to vector<4x16x16xbf16>
    "tpu.trace_start"() <{level = 10 : i32, message = "nqk,nke->nqe"}> : () -> ()
    %cst_20 = arith.constant dense<0.000000e+00> : vector<4x16x8xf32>
    %55 = tpu.matmul %54, %41, %cst_20 {dimension_numbers = #tpu.dot_dimension_numbers<[2], [1], [1], [2], [0, 0, 0, 1, 1, 2], [0], [0]>} : vector<4x16x16xbf16>, vector<4x16x8xbf16>, vector<4x16x8xf32> -> vector<4x16x8xf32>
    "tpu.trace_stop"() : () -> ()
    %56 = vector.shape_cast %55 : vector<4x16x8xf32> to vector<64x8xf32>
    %57 = arith.truncf %56 : vector<64x8xf32> to vector<64x8xbf16>
    %58 = vector.extract_strided_slice %9 {offsets = [8, 0], sizes = [8, 32], strides = [1, 1]} : vector<32x32xbf16> to vector<8x32xbf16>
    %cst_21 = arith.constant dense<0.000000e+00> : vector<64x32xf32>
    %59 = tpu.matmul %57, %58, %cst_21 {dimension_numbers = #tpu.dot_dimension_numbers<[1], [0], [0], [1], [0, 0, 1, 1], [], []>} : vector<64x8xbf16>, vector<8x32xbf16>, vector<64x32xf32> -> vector<64x32xf32>
    %60 = arith.addf %35, %59 : vector<64x32xf32>
    %61 = vector.extract_strided_slice %7 {offsets = [0, 16], sizes = [64, 8], strides = [1, 1]} : vector<64x96xbf16> to vector<64x8xbf16>
    %62 = vector.shape_cast %61 : vector<64x8xbf16> to vector<4x16x8xbf16>
    %63 = vector.extract_strided_slice %7 {offsets = [0, 48], sizes = [64, 8], strides = [1, 1]} : vector<64x96xbf16> to vector<64x8xbf16>
    %64 = vector.shape_cast %63 : vector<64x8xbf16> to vector<4x16x8xbf16>
    %65 = vector.extract_strided_slice %7 {offsets = [0, 80], sizes = [64, 8], strides = [1, 1]} : vector<64x96xbf16> to vector<64x8xbf16>
    %66 = vector.shape_cast %65 : vector<64x8xbf16> to vector<4x16x8xbf16>
    "tpu.trace_start"() <{level = 10 : i32, message = "nqe,nke->nqk"}> : () -> ()
    %cst_22 = arith.constant dense<0.000000e+00> : vector<4x16x16xf32>
    %67 = tpu.matmul %62, %64, %cst_22 {dimension_numbers = #tpu.dot_dimension_numbers<[2], [2], [1], [1], [0, 0, 0, 1, 1, 1], [0], [0]>} : vector<4x16x8xbf16>, vector<4x16x8xbf16>, vector<4x16x16xf32> -> vector<4x16x16xf32>
    "tpu.trace_stop"() : () -> ()
    %68 = arith.addf %67, %8 : vector<4x16x16xf32>
    %cst_23 = arith.constant dense<0xFF800000> : vector<4x16xf32>
    %69 = vector.multi_reduction <maximumf>, %68, %cst_23 [2] : vector<4x16x16xf32> to vector<4x16xf32>
    %70 = vector.shape_cast %69 : vector<4x16xf32> to vector<4x16x1xf32>
    %71 = vector.broadcast %70 : vector<4x16x1xf32> to vector<4x16x16xf32>
    %72 = arith.subf %68, %71 : vector<4x16x16xf32>
    %73 = math.exp %72 : vector<4x16x16xf32>
    %cst_24 = arith.constant dense<0.000000e+00> : vector<4x16xf32>
    %74 = vector.multi_reduction <add>, %73, %cst_24 [2] : vector<4x16x16xf32> to vector<4x16xf32>
    %75 = vector.shape_cast %74 : vector<4x16xf32> to vector<4x16x1xf32>
    %76 = tpu.reciprocal %75 {approx = true} : vector<4x16x1xf32> -> vector<4x16x1xf32>
    %77 = vector.broadcast %76 : vector<4x16x1xf32> to vector<4x16x16xf32>
    %78 = arith.mulf %73, %77 : vector<4x16x16xf32>
    %79 = arith.truncf %78 : vector<4x16x16xf32> to vector<4x16x16xbf16>
    "tpu.trace_start"() <{level = 10 : i32, message = "nqk,nke->nqe"}> : () -> ()
    %cst_25 = arith.constant dense<0.000000e+00> : vector<4x16x8xf32>
    %80 = tpu.matmul %79, %66, %cst_25 {dimension_numbers = #tpu.dot_dimension_numbers<[2], [1], [1], [2], [0, 0, 0, 1, 1, 2], [0], [0]>} : vector<4x16x16xbf16>, vector<4x16x8xbf16>, vector<4x16x8xf32> -> vector<4x16x8xf32>
    "tpu.trace_stop"() : () -> ()
    %81 = vector.shape_cast %80 : vector<4x16x8xf32> to vector<64x8xf32>
    %82 = arith.truncf %81 : vector<64x8xf32> to vector<64x8xbf16>
    %83 = vector.extract_strided_slice %9 {offsets = [16, 0], sizes = [8, 32], strides = [1, 1]} : vector<32x32xbf16> to vector<8x32xbf16>
    %cst_26 = arith.constant dense<0.000000e+00> : vector<64x32xf32>
    %84 = tpu.matmul %82, %83, %cst_26 {dimension_numbers = #tpu.dot_dimension_numbers<[1], [0], [0], [1], [0, 0, 1, 1], [], []>} : vector<64x8xbf16>, vector<8x32xbf16>, vector<64x32xf32> -> vector<64x32xf32>
    %85 = arith.addf %60, %84 : vector<64x32xf32>
    %86 = vector.extract_strided_slice %7 {offsets = [0, 24], sizes = [64, 8], strides = [1, 1]} : vector<64x96xbf16> to vector<64x8xbf16>
    %87 = vector.shape_cast %86 : vector<64x8xbf16> to vector<4x16x8xbf16>
    %88 = vector.extract_strided_slice %7 {offsets = [0, 56], sizes = [64, 8], strides = [1, 1]} : vector<64x96xbf16> to vector<64x8xbf16>
    %89 = vector.shape_cast %88 : vector<64x8xbf16> to vector<4x16x8xbf16>
    %90 = vector.extract_strided_slice %7 {offsets = [0, 88], sizes = [64, 8], strides = [1, 1]} : vector<64x96xbf16> to vector<64x8xbf16>
    %91 = vector.shape_cast %90 : vector<64x8xbf16> to vector<4x16x8xbf16>
    "tpu.trace_start"() <{level = 10 : i32, message = "nqe,nke->nqk"}> : () -> ()
    %cst_27 = arith.constant dense<0.000000e+00> : vector<4x16x16xf32>
    %92 = tpu.matmul %87, %89, %cst_27 {dimension_numbers = #tpu.dot_dimension_numbers<[2], [2], [1], [1], [0, 0, 0, 1, 1, 1], [0], [0]>} : vector<4x16x8xbf16>, vector<4x16x8xbf16>, vector<4x16x16xf32> -> vector<4x16x16xf32>
    "tpu.trace_stop"() : () -> ()
    %93 = arith.addf %92, %8 : vector<4x16x16xf32>
    %cst_28 = arith.constant dense<0xFF800000> : vector<4x16xf32>
    %94 = vector.multi_reduction <maximumf>, %93, %cst_28 [2] : vector<4x16x16xf32> to vector<4x16xf32>
    %95 = vector.shape_cast %94 : vector<4x16xf32> to vector<4x16x1xf32>
    %96 = vector.broadcast %95 : vector<4x16x1xf32> to vector<4x16x16xf32>
    %97 = arith.subf %93, %96 : vector<4x16x16xf32>
    %98 = math.exp %97 : vector<4x16x16xf32>
    %cst_29 = arith.constant dense<0.000000e+00> : vector<4x16xf32>
    %99 = vector.multi_reduction <add>, %98, %cst_29 [2] : vector<4x16x16xf32> to vector<4x16xf32>
    %100 = vector.shape_cast %99 : vector<4x16xf32> to vector<4x16x1xf32>
    %101 = tpu.reciprocal %100 {approx = true} : vector<4x16x1xf32> -> vector<4x16x1xf32>
    %102 = vector.broadcast %101 : vector<4x16x1xf32> to vector<4x16x16xf32>
    %103 = arith.mulf %98, %102 : vector<4x16x16xf32>
    %104 = arith.truncf %103 : vector<4x16x16xf32> to vector<4x16x16xbf16>
    "tpu.trace_start"() <{level = 10 : i32, message = "nqk,nke->nqe"}> : () -> ()
    %cst_30 = arith.constant dense<0.000000e+00> : vector<4x16x8xf32>
    %105 = tpu.matmul %104, %91, %cst_30 {dimension_numbers = #tpu.dot_dimension_numbers<[2], [1], [1], [2], [0, 0, 0, 1, 1, 2], [0], [0]>} : vector<4x16x16xbf16>, vector<4x16x8xbf16>, vector<4x16x8xf32> -> vector<4x16x8xf32>
    "tpu.trace_stop"() : () -> ()
    %106 = vector.shape_cast %105 : vector<4x16x8xf32> to vector<64x8xf32>
    %107 = arith.truncf %106 : vector<64x8xf32> to vector<64x8xbf16>
    %108 = vector.extract_strided_slice %9 {offsets = [24, 0], sizes = [8, 32], strides = [1, 1]} : vector<32x32xbf16> to vector<8x32xbf16>
    %cst_31 = arith.constant dense<0.000000e+00> : vector<64x32xf32>
    %109 = tpu.matmul %107, %108, %cst_31 {dimension_numbers = #tpu.dot_dimension_numbers<[1], [0], [0], [1], [0, 0, 1, 1], [], []>} : vector<64x8xbf16>, vector<8x32xbf16>, vector<64x32xf32> -> vector<64x32xf32>
    %110 = arith.addf %85, %109 : vector<64x32xf32>
    %c0_32 = arith.constant 0 : index
    %c0_33 = arith.constant 0 : index
    %111 = vector.load %arg7[%c0_32, %c0_33] : memref<1x32xf32, #tpu.memory_space<vmem>>, vector<1x32xf32>
    %112 = vector.broadcast %111 : vector<1x32xf32> to vector<64x32xf32>
    %113 = arith.addf %110, %112 : vector<64x32xf32>
    %c0_34 = arith.constant 0 : index
    %c0_35 = arith.constant 0 : index
    %c0_36 = arith.constant 0 : index
    %114 = vector.load %arg8[%c0_34, %c0_35, %c0_36] : memref<1x64x32xf32, #tpu.memory_space<vmem>>, vector<1x64x32xf32>
    %115 = vector.shape_cast %114 : vector<1x64x32xf32> to vector<64x32xf32>
    %116 = vector.shape_cast %113 : vector<64x32xf32> to vector<1x64x32xf32>
    tpu.vector_store %arg8[%c0_34, %c0_35, %c0_36], %116 {strides = array<i32>} : memref<1x64x32xf32, #tpu.memory_space<vmem>>, vector<1x64x32xf32>,
    return
  }
  func.func @transform_0(%arg0: i32, %arg1: i32) -> (i32, i32, i32) {
    %c0_i32 = arith.constant 0 : i32
    %c0_i32_0 = arith.constant 0 : i32
    return %arg0, %arg1, %c0_i32 : i32, i32, i32
  }
  func.func @transform_1(%arg0: i32, %arg1: i32) -> (i32, i32) {
    %c0_i32 = arith.constant 0 : i32
    %c0_i32_0 = arith.constant 0 : i32
    %c0_i32_1 = arith.constant 0 : i32
    return %c0_i32, %c0_i32_0 : i32, i32
  }
  func.func @transform_2(%arg0: i32, %arg1: i32) -> (i32, i32) {
    %c0_i32 = arith.constant 0 : i32
    %c0_i32_0 = arith.constant 0 : i32
    %c0_i32_1 = arith.constant 0 : i32
    return %c0_i32, %c0_i32_0 : i32, i32
  }
  func.func @transform_3(%arg0: i32, %arg1: i32) -> (i32, i32, i32) {
    %c0_i32 = arith.constant 0 : i32
    %c0_i32_0 = arith.constant 0 : i32
    %c0_i32_1 = arith.constant 0 : i32
    return %arg1, %c0_i32, %c0_i32_0 : i32, i32, i32
  }
  func.func @transform_4(%arg0: i32, %arg1: i32) -> (i32, i32) {
    %c0_i32 = arith.constant 0 : i32
    %c0_i32_0 = arith.constant 0 : i32
    %c0_i32_1 = arith.constant 0 : i32
    return %c0_i32, %c0_i32_0 : i32, i32
  }
  func.func @transform_5(%arg0: i32, %arg1: i32) -> (i32, i32) {
    %c0_i32 = arith.constant 0 : i32
    %c0_i32_0 = arith.constant 0 : i32
    %c0_i32_1 = arith.constant 0 : i32
    return %c0_i32, %c0_i32_0 : i32, i32
  }
  func.func @transform_6(%arg0: i32, %arg1: i32) -> (i32, i32, i32) {
    %c0_i32 = arith.constant 0 : i32
    %c0_i32_0 = arith.constant 0 : i32
    return %arg0, %arg1, %c0_i32 : i32, i32, i32
  }
}

</mosaic_0001>

<llo_original>
// kernel: tpu_custom_call.1
$region0: #{tpu_custom_call.1}
  #allocation0 [shape = 'u32[]', space=smem, size = 0x4, offset = 0x4, fixed_abs, tag = 'smem constant byte address 0x4 - core index']
  #allocation1 [shape = 'u32[144,128]{1,0:T(1,128)}', space=vmem, size = 0x12000, scoped, tag = 'internal scratch']
  %s0 = inlined_call_operand.vmem [shape: bf16[2,64,32], index: 0, kind: input, shape index: {}]
  %s1 = inlined_call_operand.vmem [shape: bf16[32,96], index: 1, kind: input, shape index: {}]
  %s2 = inlined_call_operand.vmem [shape: f32[1,96], index: 2, kind: input, shape index: {}]
  %s3 = inlined_call_operand.vmem [shape: f32[4,16,16], index: 3, kind: input, shape index: {}]
  %s4 = inlined_call_operand.vmem [shape: bf16[32,32], index: 4, kind: input, shape index: {}]
  %s5 = inlined_call_operand.vmem [shape: f32[1,32], index: 5, kind: input, shape index: {}]
  %s6 = inlined_call_operand.vmem [shape: f32[2,64,32], index: 6, kind: output, shape index: {}]
  %s7 = sld [smem:[#allocation0]]
  $region57: #{tpu_custom_call.1} parent=0
    _
  %s9 = ssub.s32 1, %s7
  %s10 = scalar_select 0, %s9, %s7
  loop: start=0, step=1, limit=4
  $region2: #{tpu_custom_call.1} parent=0 // loop_pre_header
    _
  $region3: #{tpu_custom_call.1} parent=0 // loop_header
    %s12 = sphi 0, %s16
    %p13 = scmp.ge.s32.totalorder %s12, 4
    %s19 = sphi 0, %s31
    %s20 = sphi 0, %s27
    %s21 = sphi 0, %s19
    %s22 = sphi 0, %s20
    %s23 = sphi 0, %s21
    %s24 = sphi 0, %s22
    %s36 = sphi 0, %s38
    %s39 = sphi 0, %s36
    %s40 = sphi 0, %s39
    %s56 = sphi 0, %s40
    %s60 = sphi 0, %s60
    %s62 = sphi 0, %s60
    %s63 = sphi 0, %s62
    %s77 = sphi 0, %s63
    %s81 = sphi 0, %s81
    %s83 = sphi 0, %s81
    %s84 = sphi 0, %s83
    %s98 = sphi 0, %s84
    %s104 = sphi 0, %s106
    %s107 = sphi 0, %s104
    %s108 = sphi 0, %s107
    %s124 = sphi 0, %s108
    %s128 = sphi 0, %s128
    %s130 = sphi 0, %s128
    %s131 = sphi 0, %s130
    %s145 = sphi 0, %s131
    %s149 = sphi 0, %s149
    %s151 = sphi 0, %s149
    %s152 = sphi 0, %s151
    %s166 = sphi 0, %s152
    %s174 = sphi 0, %s176
    %s177 = sphi 0, %s174
    %s178 = sphi 0, %s177
    %s194 = sphi 0, %s178
  $region4: #{tpu_custom_call.1} parent=0 // loop_header_branch
    %15 = sbr.rel (%p13) target = $region8
  $region5: #{tpu_custom_call.1} parent=0 // loop_body
    %s17 = ssub.s32 %s12, 1
    %s18 = ssub.s32 %s12, 2
    %s25 = sadd.s32 1, %s20
    %p26 = scmp.ge.s32.totalorder %s25, 1
    %s27 = scalar_select %p26, 0, %s25
    %s28 = sadd.s32 1, %s19
    %s29 = scalar_select %p26, %s28, %s19
    %p30 = scmp.ge.s32.totalorder %s29, 2
    %s31 = scalar_select %p30, 0, %s29
    %s32 = ssub.s32 %s19, %s31
    %s33 = ssub.s32 %s20, %s27
    %s34 = sor.u32 %s32, %s33
    %p35 = scmp.eq.s32.totalorder %s34, 0
    %s37 = sadd.s32 %s36, 1
    %s38 = scalar_select %p35, %s36, %s37
    %p41 = pneg %p35
    %p42 = scmp.eq.s32.totalorder %s12, 1
    %p43 = por %p41, %p42
    %p44 = scmp.ne.s32.totalorder %s36, %s39
    %p45 = scmp.eq.s32.totalorder %s12, 0
    %p46 = por %p44, %p45
    %p47 = scmp.ne.s32.totalorder %s36, %s39
    %p48 = scmp.eq.s32.totalorder %s17, 1
    %p49 = por %p47, %p48
    %p50 = scmp.ne.s32.totalorder %s39, %s40
    %p51 = scmp.eq.s32.totalorder %s17, 0
    %p52 = por %p50, %p51
    %p53 = scmp.ne.s32.totalorder %s39, %s40
    %p54 = scmp.eq.s32.totalorder %s18, 1
    %p55 = por %p53, %p54
    %p57 = scmp.ne.s32.totalorder %s40, %s56
    %p58 = scmp.eq.s32.totalorder %s18, 0
    %p59 = por %p57, %p58
    %s61 = sadd.s32 %s60, 1
    %p64 = scmp.eq.s32.totalorder %s12, 1
    %p65 = scmp.ne.s32.totalorder %s60, %s62
    %p66 = scmp.eq.s32.totalorder %s12, 0
    %p67 = por %p65, %p66
    %p68 = scmp.ne.s32.totalorder %s60, %s62
    %p69 = scmp.eq.s32.totalorder %s17, 1
    %p70 = por %p68, %p69
    %p71 = scmp.ne.s32.totalorder %s62, %s63
    %p72 = scmp.eq.s32.totalorder %s17, 0
    %p73 = por %p71, %p72
    %p74 = scmp.ne.s32.totalorder %s62, %s63
    %p75 = scmp.eq.s32.totalorder %s18, 1
    %p76 = por %p74, %p75
    %p78 = scmp.ne.s32.totalorder %s63, %s77
    %p79 = scmp.eq.s32.totalorder %s18, 0
    %p80 = por %p78, %p79
    %s82 = sadd.s32 %s81, 1
    %p85 = scmp.eq.s32.totalorder %s12, 1
    %p86 = scmp.ne.s32.totalorder %s81, %s83
    %p87 = scmp.eq.s32.totalorder %s12, 0
    %p88 = por %p86, %p87
    %p89 = scmp.ne.s32.totalorder %s81, %s83
    %p90 = scmp.eq.s32.totalorder %s17, 1
    %p91 = por %p89, %p90
    %p92 = scmp.ne.s32.totalorder %s83, %s84
    %p93 = scmp.eq.s32.totalorder %s17, 0
    %p94 = por %p92, %p93
    %p95 = scmp.ne.s32.totalorder %s83, %s84
    %p96 = scmp.eq.s32.totalorder %s18, 1
    %p97 = por %p95, %p96
    %p99 = scmp.ne.s32.totalorder %s84, %s98
    %p100 = scmp.eq.s32.totalorder %s18, 0
    %p101 = por %p99, %p100
    %s102 = ssub.s32 %s20, %s27
    %p103 = scmp.eq.s32.totalorder %s102, 0
    %s105 = sadd.s32 %s104, 1
    %s106 = scalar_select %p103, %s104, %s105
    %p109 = pneg %p103
    %p110 = scmp.eq.s32.totalorder %s12, 1
    %p111 = por %p109, %p110
    %p112 = scmp.ne.s32.totalorder %s104, %s107
    %p113 = scmp.eq.s32.totalorder %s12, 0
    %p114 = por %p112, %p113
    %p115 = scmp.ne.s32.totalorder %s104, %s107
    %p116 = scmp.eq.s32.totalorder %s17, 1
    %p117 = por %p115, %p116
    %p118 = scmp.ne.s32.totalorder %s107, %s108
    %p119 = scmp.eq.s32.totalorder %s17, 0
    %p120 = por %p118, %p119
    %p121 = scmp.ne.s32.totalorder %s107, %s108
    %p122 = scmp.eq.s32.totalorder %s18, 1
    %p123 = por %p121, %p122
    %p125 = scmp.ne.s32.totalorder %s108, %s124
    %p126 = scmp.eq.s32.totalorder %s18, 0
    %p127 = por %p125, %p126
    %s129 = sadd.s32 %s128, 1
    %p132 = scmp.eq.s32.totalorder %s12, 1
    %p133 = scmp.ne.s32.totalorder %s128, %s130
    %p134 = scmp.eq.s32.totalorder %s12, 0
    %p135 = por %p133, %p134
    %p136 = scmp.ne.s32.totalorder %s128, %s130
    %p137 = scmp.eq.s32.totalorder %s17, 1
    %p138 = por %p136, %p137
    %p139 = scmp.ne.s32.totalorder %s130, %s131
    %p140 = scmp.eq.s32.totalorder %s17, 0
    %p141 = por %p139, %p140
    %p142 = scmp.ne.s32.totalorder %s130, %s131
    %p143 = scmp.eq.s32.totalorder %s18, 1
    %p144 = por %p142, %p143
    %p146 = scmp.ne.s32.totalorder %s131, %s145
    %p147 = scmp.eq.s32.totalorder %s18, 0
    %p148 = por %p146, %p147
    %s150 = sadd.s32 %s149, 1
    %p153 = scmp.eq.s32.totalorder %s12, 1
    %p154 = scmp.ne.s32.totalorder %s149, %s151
    %p155 = scmp.eq.s32.totalorder %s12, 0
    %p156 = por %p154, %p155
    %p157 = scmp.ne.s32.totalorder %s149, %s151
    %p158 = scmp.eq.s32.totalorder %s17, 1
    %p159 = por %p157, %p158
    %p160 = scmp.ne.s32.totalorder %s151, %s152
    %p161 = scmp.eq.s32.totalorder %s17, 0
    %p162 = por %p160, %p161
    %p163 = scmp.ne.s32.totalorder %s151, %s152
    %p164 = scmp.eq.s32.totalorder %s18, 1
    %p165 = por %p163, %p164
    %p167 = scmp.ne.s32.totalorder %s152, %s166
    %p168 = scmp.eq.s32.totalorder %s18, 0
    %p169 = por %p167, %p168
    %s170 = ssub.s32 %s19, %s31
    %s171 = ssub.s32 %s20, %s27
    %s172 = sor.u32 %s170, %s171
    %p173 = scmp.eq.s32.totalorder %s172, 0
    %s175 = sadd.s32 %s174, 1
    %s176 = scalar_select %p173, %s174, %s175
    %p179 = pneg %p173
    %p180 = scmp.eq.s32.totalorder %s12, 1
    %p181 = por %p179, %p180
    %p182 = scmp.ne.s32.totalorder %s174, %s177
    %p183 = scmp.eq.s32.totalorder %s12, 0
    %p184 = por %p182, %p183
    %p185 = scmp.ne.s32.totalorder %s174, %s177
    %p186 = scmp.eq.s32.totalorder %s17, 1
    %p187 = por %p185, %p186
    %p188 = scmp.ne.s32.totalorder %s177, %s178
    %p189 = scmp.eq.s32.totalorder %s17, 0
    %p190 = por %p188, %p189
    %p191 = scmp.ne.s32.totalorder %s177, %s178
    %p192 = scmp.eq.s32.totalorder %s18, 1
    %p193 = por %p191, %p192
    %p195 = scmp.ne.s32.totalorder %s178, %s194
    %p196 = scmp.eq.s32.totalorder %s18, 0
    %p197 = por %p195, %p196
    %p198 = scmp.le.s32.totalorder 1, %s12
    %p199 = scmp.lt.s32.totalorder %s12, 3
    %p200 = pnand %p198, %p199
    %p201 = pneg %p200
    // Predicated region
    $region9: #{tpu_custom_call.1} parent=5 // pred_check
      _
    $region10: #{tpu_custom_call.1} parent=5 // pred_check_branch
      %203 = sbr.rel (%p200) target = $region12
    $region11: #{tpu_custom_call.1} parent=5 // pred_region
      %s204 = ssub.s32 %s12, 1
      // Predicated region
      $region13: #{tpu_custom_call.1} parent=11 // pred_check
        %p205 = pneg %p73
      $region14: #{tpu_custom_call.1} parent=11 // pred_check_branch
        %207 = sbr.rel (%p205) target = $region16
      $region15: #{tpu_custom_call.1} parent=11 // pred_region
        _
      $region16: #{tpu_custom_call.1} parent=11 // pred_fallthru
        _
      // Predicated region
      $region17: #{tpu_custom_call.1} parent=11 // pred_check
        %p208 = pneg %p94
      $region18: #{tpu_custom_call.1} parent=11 // pred_check_branch
        %210 = sbr.rel (%p208) target = $region20
      $region19: #{tpu_custom_call.1} parent=11 // pred_region
        _
      $region20: #{tpu_custom_call.1} parent=11 // pred_fallthru
        _
      // Predicated region
      $region21: #{tpu_custom_call.1} parent=11 // pred_check
        %p211 = pneg %p120
      $region22: #{tpu_custom_call.1} parent=11 // pred_check_branch
        %213 = sbr.rel (%p211) target = $region24
      $region23: #{tpu_custom_call.1} parent=11 // pred_region
        %s214 = smul.u32 4, %s22
        %p215 = scmp.lt.s32.totalorder %s214, 3
        %s216 = scalar_select %p215, %s214, 3
        %s217 = smul.addr %s216, 2
        %s218 = smul.addr %s217, 8
        %s219 = scalar_lea.vmem %s3, %s218
        %s220 = smul.u32 4, %s22
      $region24: #{tpu_custom_call.1} parent=11 // pred_fallthru
        _
      // Predicated region
      $region25: #{tpu_custom_call.1} parent=11 // pred_check
        %p221 = pneg %p141
      $region26: #{tpu_custom_call.1} parent=11 // pred_check_branch
        %223 = sbr.rel (%p221) target = $region28
      $region27: #{tpu_custom_call.1} parent=11 // pred_region
        _
      $region28: #{tpu_custom_call.1} parent=11 // pred_fallthru
        _
      // Predicated region
      $region29: #{tpu_custom_call.1} parent=11 // pred_check
        %p224 = pneg %p162
      $region30: #{tpu_custom_call.1} parent=11 // pred_check_branch
        %226 = sbr.rel (%p224) target = $region32
      $region31: #{tpu_custom_call.1} parent=11 // pred_region
        _
      $region32: #{tpu_custom_call.1} parent=11 // pred_fallthru
        _
    $region12: #{tpu_custom_call.1} parent=5 // pred_fallthru
      _
    %p227 = scmp.lt.s32.totalorder %s12, 2
    // Predicated region
    $region33: #{tpu_custom_call.1} parent=5 // pred_check
      %p228 = pneg %p227
    $region34: #{tpu_custom_call.1} parent=5 // pred_check_branch
      %230 = sbr.rel (%p228) target = $region36
    $region35: #{tpu_custom_call.1} parent=5 // pred_region
      // Predicated region
      $region37: #{tpu_custom_call.1} parent=35 // pred_check
        %p231 = pneg %p46
      $region38: #{tpu_custom_call.1} parent=35 // pred_check_branch
        %233 = sbr.rel (%p231) target = $region40
      $region39: #{tpu_custom_call.1} parent=35 // pred_region
        %s234 = smul.u32 8, %s20
        %p235 = scmp.lt.s32.totalorder %s19, 1
        %s236 = scalar_select %p235, %s19, 1
        %p237 = scmp.lt.s32.totalorder %s234, 7
        %s238 = scalar_select %p237, %s234, 7
        %s239 = smul.addr %s236, 8
        %s240 = sadd.s32 %s238, %s239
        %s241 = smul.addr %s240, 4
        %s242 = scalar_lea.vmem %s0, %s241
        %s243 = smul.u32 8, %s20
      $region40: #{tpu_custom_call.1} parent=35 // pred_fallthru
        _
    $region36: #{tpu_custom_call.1} parent=5 // pred_fallthru
      _
    %p244 = scmp.le.s32.totalorder 1, %s12
    %p245 = scmp.lt.s32.totalorder %s12, 3
    %p246 = pnand %p244, %p245
    %p247 = pneg %p246
    // Predicated region
    $region41: #{tpu_custom_call.1} parent=5 // pred_check
      _
    $region42: #{tpu_custom_call.1} parent=5 // pred_check_branch
      %249 = sbr.rel (%p246) target = $region44
    $region43: #{tpu_custom_call.1} parent=5 // pred_region
      %s250 = ssub.s32 %s12, 1
      %s251 = smul.u32 8, %s22
      %p252 = scmp.lt.s32.totalorder %s21, 1
      %s253 = scalar_select %p252, %s21, 1
      %p254 = scmp.lt.s32.totalorder %s251, 7
      %s255 = scalar_select %p254, %s251, 7
      %s256 = smul.addr %s253, 8
      %s257 = sadd.s32 %s255, %s256
      %s258 = smul.addr %s257, 4
      %s259 = scalar_lea.vmem %s0, %s258
      %p260 = pneg %p52
      %p261 = pneg %p49
      %p262 = pneg %p73
      %p263 = pneg %p70
      %p264 = pneg %p94
      %p265 = pneg %p91
      %s266 = smul.u32 4, %s22
      %p267 = scmp.lt.s32.totalorder %s266, 3
      %s268 = scalar_select %p267, %s266, 3
      %s269 = smul.addr %s268, 2
      %s270 = smul.addr %s269, 8
      %s271 = scalar_lea.vmem %s3, %s270
      %p272 = pneg %p120
      %p273 = pneg %p117
      %p274 = pneg %p141
      %p275 = pneg %p138
      %p276 = pneg %p162
      %p277 = pneg %p159
      %p278 = pneg %p190
      %p279 = pneg %p187
      %s280 = smul.u32 8, %s22
      %p281 = scmp.lt.s32.totalorder %s21, 1
      %s282 = scalar_select %p281, %s21, 1
      %p283 = scmp.lt.s32.totalorder %s280, 7
      %s284 = scalar_select %p283, %s280, 7
      %s285 = smul.addr %s282, 8
      %s286 = sadd.s32 %s284, %s285
      %s287 = smul.addr %s286, 8
      %s288 = scalar_lea.vmem %s6, %s287
      %s289 = smul.u32 8, %s22
      %p290 = scmp.lt.s32.totalorder %s21, 1
      %s291 = scalar_select %p290, %s21, 1
      %p292 = scmp.lt.s32.totalorder %s289, 7
      %s293 = scalar_select %p292, %s289, 7
      %s294 = smul.addr %s291, 8
      %s295 = sadd.s32 %s293, %s294
      %s296 = smul.addr %s295, 4
      %s297 = scalar_lea.vmem %s0, %s296
      %s298 = smul.u32 8, %s22
      %s299 = smul.u32 4, %s22
      %p300 = scmp.lt.s32.totalorder %s299, 3
      %s301 = scalar_select %p300, %s299, 3
      %s302 = smul.addr %s301, 2
      %s303 = smul.addr %s302, 8
      %s304 = scalar_lea.vmem %s3, %s303
      %s305 = smul.u32 4, %s22
      %s306 = smul.u32 8, %s22
      %p307 = scmp.lt.s32.totalorder %s21, 1
      %s308 = scalar_select %p307, %s21, 1
      %p309 = scmp.lt.s32.totalorder %s306, 7
      %s310 = scalar_select %p309, %s306, 7
      %s311 = smul.addr %s308, 8
      %s312 = sadd.s32 %s310, %s311
      %s313 = smul.addr %s312, 8
      %s314 = scalar_lea.vmem %s6, %s313
      %s315 = smul.u32 8, %s22
      %v317 = vld [vmem:[%s297] sm:$0xf]
      %v318 = vld [vmem:[%s297 + $0x4] sm:$0xf]
      %v319 = vld [vmem:[%s297 + $0x8] sm:$0xf]
      %v320 = vld [vmem:[%s297 + $0xc] sm:$0xf]
      %v321 = vld [vmem:[%s297 + $0x10] sm:$0xf]
      %v322 = vld [vmem:[%s297 + $0x14] sm:$0xf]
      %v323 = vld [vmem:[%s297 + $0x18] sm:$0xf]
      %v324 = vld [vmem:[%s297 + $0x1c] sm:$0xf]
      %v325 = vld [vmem:[%s1] sm:$0xf]
      %v326 = vld [vmem:[%s1 + $0x4] sm:$0xf]
      %v327 = vld [vmem:[%s1 + $0x8] sm:$0xf]
      %v328 = vld [vmem:[%s1 + $0xc] sm:$0xf]
      %v329 = vld [vmem:[%s2] sm:$0x1]
      %v331 = vlaneseq
      %v332 = vshrl.u32 %v331, 7
      %v333 = vsub.s32 0, %v332
      %v334 = vrot.slane %v329, %v333
      %v344 = vunpack.c.l.b16 %v317
      %v345 = vunpack.c.l.b16 %v318
      %v346 = vunpack.c.l.b16 %v319
      %v347 = vunpack.c.l.b16 %v320
      %v348 = vunpack.c.l.b16 %v321
      %v349 = vunpack.c.l.b16 %v322
      %v350 = vunpack.c.l.b16 %v323
      %v351 = vunpack.c.l.b16 %v324
      %v352 = vpack.c.b16 %v345, %v344
      %v353 = vpack.c.b16 %v347, %v346
      %v354 = vpack.c.b16 %v349, %v348
      %v355 = vpack.c.b16 %v351, %v350
      %v360 = vunpack.c.l.b16 %v325
      %v361 = vunpack.c.l.b16 %v326
      %v362 = vunpack.c.l.b16 %v327
      %v363 = vunpack.c.l.b16 %v328
      %v364 = vpack.c.b16 %v361, %v360
      %v365 = vpack.c.b16 %v363, %v362
      %vm368 = vcmask 261120
      %v370 = vsel %vm368, %v352, 0
      %v373 = vsel %vm368, %v353, 0
      %v376 = vsel %vm368, %v354, 0
      %v379 = vsel %vm368, %v355, 0
      %381 = vmatprep.subr.bf16.mxu0 0
      %382 = vmatpush1.bf16.msra.mxu0 %v364
      %383 = vmatprep.subr.bf16.mxu0 0
      %384 = vmatpush1.bf16.msra.mxu0 %v365
      %385 = vmatprep.subr.bf16.mxu0 0
      %386 = vmatpush1.bf16.msra.mxu0 0
      %387 = vmatprep.subr.bf16.mxu0 0
      %388 = vmatpush1.bf16.msra.mxu0 0
      %389 = vmatprep.subr.bf16.mxu0 0
      %390 = vmatpush1.bf16.msra.mxu0 0
      %391 = vmatprep.subr.bf16.mxu0 0
      %392 = vmatpush1.bf16.msra.mxu0 0
      %393 = vmatprep.subr.bf16.mxu0 0
      %394 = vmatpush1.bf16.msra.mxu0 0
      %395 = vmatprep.subr.bf16.mxu0 0
      %396 = vmatpush1.bf16.msra.mxu0 0
      %397 = vmatprep.subr.bf16.mxu0 0
      %398 = vmatpush1.bf16.msra.mxu0 0
      %399 = vmatprep.subr.bf16.mxu0 0
      %400 = vmatpush1.bf16.msra.mxu0 0
      %401 = vmatprep.subr.bf16.mxu0 0
      %402 = vmatpush1.bf16.msra.mxu0 0
      %403 = vmatprep.subr.bf16.mxu0 0
      %404 = vmatpush1.bf16.msra.mxu0 0
      %405 = vmatprep.subr.bf16.mxu0 0
      %406 = vmatpush1.bf16.msra.mxu0 0
      %407 = vmatprep.subr.bf16.mxu0 0
      %408 = vmatpush1.bf16.msra.mxu0 0
      %409 = vmatprep.subr.bf16.mxu0 0
      %410 = vmatpush1.bf16.msra.mxu0 0
      %411 = vmatprep.subr.bf16.mxu0 0
      %412 = vmatpush1.bf16.msra.mxu0 0
      %413 = vmatprep.mubr.bf16.mxu0 0
      %414 = vmatmul.mubr.bf16.gmra.mrb[0].mxu0 %v370
      %v415 = vpop.f32.mrb[0].mxu0
      %v416 = vadd.f32 %v334, %v415
      %v417 = vpop.f32.mrb[0].mxu0
      %v418 = vpop.f32.mrb[0].mxu0
      %v419 = vadd.f32 %v334, %v418
      %v420 = vpop.f32.mrb[0].mxu0
      %421 = vmatprep.mubr.bf16.mxu0 0
      %422 = vmatmul.mubr.bf16.gmra.mrb[0].mxu0 %v373
      %v423 = vpop.f32.mrb[0].mxu0
      %v424 = vadd.f32 %v334, %v423
      %v425 = vpop.f32.mrb[0].mxu0
      %v426 = vpop.f32.mrb[0].mxu0
      %v427 = vadd.f32 %v334, %v426
      %v428 = vpop.f32.mrb[0].mxu0
      %429 = vmatprep.mubr.bf16.mxu0 0
      %430 = vmatmul.mubr.bf16.gmra.mrb[0].mxu0 %v376
      %v431 = vpop.f32.mrb[0].mxu0
      %v432 = vadd.f32 %v334, %v431
      %v433 = vpop.f32.mrb[0].mxu0
      %v434 = vpop.f32.mrb[0].mxu0
      %v435 = vadd.f32 %v334, %v434
      %v436 = vpop.f32.mrb[0].mxu0
      %437 = vmatprep.mubr.bf16.mxu0 0
      %438 = vmatmul.mubr.bf16.gmra.mrb[0].mxu0 %v379
      %v439 = vpop.f32.mrb[0].mxu0
      %v440 = vadd.f32 %v334, %v439
      %v441 = vpop.f32.mrb[0].mxu0
      %v442 = vpop.f32.mrb[0].mxu0
      %v443 = vadd.f32 %v334, %v442
      %v444 = vpop.f32.mrb[0].mxu0
      %445 = vdwg.mxu0
      %v446 = vpack.c.bf16 %v419, %v416
      %v447 = vpack.c.bf16 %v427, %v424
      %v448 = vpack.c.bf16 %v435, %v432
      %v449 = vpack.c.bf16 %v443, %v440
      %v450 = vld [vmem:[%s304] sm:$0xff]
      %v451 = vld [vmem:[%s304 + $0x8] sm:$0xff]
      %v452 = vld [vmem:[%s304 + $0x10] sm:$0xff]
      %v453 = vld [vmem:[%s304 + $0x18] sm:$0xff]
      %v454 = vld [vmem:[%s304 + $0x20] sm:$0xff]
      %v455 = vld [vmem:[%s304 + $0x28] sm:$0xff]
      %v456 = vld [vmem:[%s304 + $0x30] sm:$0xff]
      %v457 = vld [vmem:[%s304 + $0x38] sm:$0xff]
      %v458 = vld [vmem:[%s4] sm:$0xf]
      %v459 = vld [vmem:[%s4 + $0x4] sm:$0xf]
      %v460 = vld [vmem:[%s4 + $0x8] sm:$0xf]
      %v461 = vld [vmem:[%s4 + $0xc] sm:$0xf]
      %463 = vrot.lane.b32.xlu0 %v446, 96
      %v464 = vpop.permute.xlu0 %463
      %vm465 = vcmask 64512
      %v467 = vsel %vm465, %v446, 0
      %v470 = vsel %vm465, %v464, 0
      %472 = vmatprep.subr.bf16.mxu0 0
      %473 = vmatpush1.bf16.xpose.msra.mxu0 %v470
      %474 = vmatprep.subr.bf16.mxu0 0
      %475 = vmatpush1.bf16.xpose.msra.mxu0 0
      %476 = vmatprep.subr.bf16.mxu0 0
      %477 = vmatpush1.bf16.xpose.msra.mxu0 0
      %478 = vmatprep.subr.bf16.mxu0 0
      %479 = vmatpush1.bf16.xpose.msra.mxu0 0
      %480 = vmatprep.subr.bf16.mxu0 0
      %481 = vmatpush1.bf16.xpose.msra.mxu0 0
      %482 = vmatprep.subr.bf16.mxu0 0
      %483 = vmatpush1.bf16.xpose.msra.mxu0 0
      %484 = vmatprep.subr.bf16.mxu0 0
      %485 = vmatpush1.bf16.xpose.msra.mxu0 0
      %486 = vmatprep.subr.bf16.mxu0 0
      %487 = vmatpush1.bf16.xpose.msra.mxu0 0
      %488 = vmatprep.subr.bf16.mxu0 0
      %489 = vmatpush1.bf16.xpose.msra.mxu0 0
      %490 = vmatprep.subr.bf16.mxu0 0
      %491 = vmatpush1.bf16.xpose.msra.mxu0 0
      %492 = vmatprep.subr.bf16.mxu0 0
      %493 = vmatpush1.bf16.xpose.msra.mxu0 0
      %494 = vmatprep.subr.bf16.mxu0 0
      %495 = vmatpush1.bf16.xpose.msra.mxu0 0
      %496 = vmatprep.subr.bf16.mxu0 0
      %497 = vmatpush1.bf16.xpose.msra.mxu0 0
      %498 = vmatprep.subr.bf16.mxu0 0
      %499 = vmatpush1.bf16.xpose.msra.mxu0 0
      %500 = vmatprep.subr.bf16.mxu0 0
      %501 = vmatpush1.bf16.xpose.msra.mxu0 0
      %502 = vmatprep.subr.bf16.mxu0 0
      %503 = vmatpush1.bf16.xpose.msra.mxu0 0
      %504 = vmatprep.mubr.bf16.mxu0 0
      %505 = vmatmul.mubr.bf16.gmra.mrb[0].mxu0 %v467
      %v506 = vpop.f32.mrb[0].mxu0
      %v507 = vadd.f32 %v450, %v506
      %v508 = vpop.f32.mrb[0].mxu0
      %v509 = vpop.f32.mrb[0].mxu0
      %v510 = vadd.f32 %v451, %v509
      %v511 = vpop.f32.mrb[0].mxu0
      %512 = vdwg.mxu0
      %514 = vrot.lane.b32.xlu0 %v447, 96
      %v515 = vpop.permute.xlu0 %514
      %v517 = vsel %vm465, %v447, 0
      %v520 = vsel %vm465, %v515, 0
      %522 = vmatprep.subr.bf16.mxu0 0
      %523 = vmatpush1.bf16.xpose.msra.mxu0 %v520
      %524 = vmatprep.subr.bf16.mxu0 0
      %525 = vmatpush1.bf16.xpose.msra.mxu0 0
      %526 = vmatprep.subr.bf16.mxu0 0
      %527 = vmatpush1.bf16.xpose.msra.mxu0 0
      %528 = vmatprep.subr.bf16.mxu0 0
      %529 = vmatpush1.bf16.xpose.msra.mxu0 0
      %530 = vmatprep.subr.bf16.mxu0 0
      %531 = vmatpush1.bf16.xpose.msra.mxu0 0
      %532 = vmatprep.subr.bf16.mxu0 0
      %533 = vmatpush1.bf16.xpose.msra.mxu0 0
      %534 = vmatprep.subr.bf16.mxu0 0
      %535 = vmatpush1.bf16.xpose.msra.mxu0 0
      %536 = vmatprep.subr.bf16.mxu0 0
      %537 = vmatpush1.bf16.xpose.msra.mxu0 0
      %538 = vmatprep.subr.bf16.mxu0 0
      %539 = vmatpush1.bf16.xpose.msra.mxu0 0
      %540 = vmatprep.subr.bf16.mxu0 0
      %541 = vmatpush1.bf16.xpose.msra.mxu0 0
      %542 = vmatprep.subr.bf16.mxu0 0
      %543 = vmatpush1.bf16.xpose.msra.mxu0 0
      %544 = vmatprep.subr.bf16.mxu0 0
      %545 = vmatpush1.bf16.xpose.msra.mxu0 0
      %546 = vmatprep.subr.bf16.mxu0 0
      %547 = vmatpush1.bf16.xpose.msra.mxu0 0
      %548 = vmatprep.subr.bf16.mxu0 0
      %549 = vmatpush1.bf16.xpose.msra.mxu0 0
      %550 = vmatprep.subr.bf16.mxu0 0
      %551 = vmatpush1.bf16.xpose.msra.mxu0 0
      %552 = vmatprep.subr.bf16.mxu0 0
      %553 = vmatpush1.bf16.xpose.msra.mxu0 0
      %554 = vmatprep.mubr.bf16.mxu0 0
      %555 = vmatmul.mubr.bf16.gmra.mrb[0].mxu0 %v517
      %v556 = vpop.f32.mrb[0].mxu0
      %v557 = vadd.f32 %v452, %v556
      %v558 = vpop.f32.mrb[0].mxu0
      %v559 = vpop.f32.mrb[0].mxu0
      %v560 = vadd.f32 %v453, %v559
      %v561 = vpop.f32.mrb[0].mxu0
      %562 = vdwg.mxu0
      %564 = vrot.lane.b32.xlu0 %v448, 96
      %v565 = vpop.permute.xlu0 %564
      %v567 = vsel %vm465, %v448, 0
      %v570 = vsel %vm465, %v565, 0
      %572 = vmatprep.subr.bf16.mxu0 0
      %573 = vmatpush1.bf16.xpose.msra.mxu0 %v570
      %574 = vmatprep.subr.bf16.mxu0 0
      %575 = vmatpush1.bf16.xpose.msra.mxu0 0
      %576 = vmatprep.subr.bf16.mxu0 0
      %577 = vmatpush1.bf16.xpose.msra.mxu0 0
      %578 = vmatprep.subr.bf16.mxu0 0
      %579 = vmatpush1.bf16.xpose.msra.mxu0 0
      %580 = vmatprep.subr.bf16.mxu0 0
      %581 = vmatpush1.bf16.xpose.msra.mxu0 0
      %582 = vmatprep.subr.bf16.mxu0 0
      %583 = vmatpush1.bf16.xpose.msra.mxu0 0
      %584 = vmatprep.subr.bf16.mxu0 0
      %585 = vmatpush1.bf16.xpose.msra.mxu0 0
      %586 = vmatprep.subr.bf16.mxu0 0
      %587 = vmatpush1.bf16.xpose.msra.mxu0 0
      %588 = vmatprep.subr.bf16.mxu0 0
      %589 = vmatpush1.bf16.xpose.msra.mxu0 0
      %590 = vmatprep.subr.bf16.mxu0 0
      %591 = vmatpush1.bf16.xpose.msra.mxu0 0
      %592 = vmatprep.subr.bf16.mxu0 0
      %593 = vmatpush1.bf16.xpose.msra.mxu0 0
      %594 = vmatprep.subr.bf16.mxu0 0
      %595 = vmatpush1.bf16.xpose.msra.mxu0 0
      %596 = vmatprep.subr.bf16.mxu0 0
      %597 = vmatpush1.bf16.xpose.msra.mxu0 0
      %598 = vmatprep.subr.bf16.mxu0 0
      %599 = vmatpush1.bf16.xpose.msra.mxu0 0
      %600 = vmatprep.subr.bf16.mxu0 0
      %601 = vmatpush1.bf16.xpose.msra.mxu0 0
      %602 = vmatprep.subr.bf16.mxu0 0
      %603 = vmatpush1.bf16.xpose.msra.mxu0 0
      %604 = vmatprep.mubr.bf16.mxu0 0
      %605 = vmatmul.mubr.bf16.gmra.mrb[0].mxu0 %v567
      %v606 = vpop.f32.mrb[0].mxu0
      %v607 = vadd.f32 %v454, %v606
      %v608 = vpop.f32.mrb[0].mxu0
      %v609 = vpop.f32.mrb[0].mxu0
      %v610 = vadd.f32 %v455, %v609
      %v611 = vpop.f32.mrb[0].mxu0
      %612 = vdwg.mxu0
      %614 = vrot.lane.b32.xlu0 %v449, 96
      %v615 = vpop.permute.xlu0 %614
      %v617 = vsel %vm465, %v449, 0
      %v620 = vsel %vm465, %v615, 0
      %622 = vmatprep.subr.bf16.mxu0 0
      %623 = vmatpush1.bf16.xpose.msra.mxu0 %v620
      %624 = vmatprep.subr.bf16.mxu0 0
      %625 = vmatpush1.bf16.xpose.msra.mxu0 0
      %626 = vmatprep.subr.bf16.mxu0 0
      %627 = vmatpush1.bf16.xpose.msra.mxu0 0
      %628 = vmatprep.subr.bf16.mxu0 0
      %629 = vmatpush1.bf16.xpose.msra.mxu0 0
      %630 = vmatprep.subr.bf16.mxu0 0
      %631 = vmatpush1.bf16.xpose.msra.mxu0 0
      %632 = vmatprep.subr.bf16.mxu0 0
      %633 = vmatpush1.bf16.xpose.msra.mxu0 0
      %634 = vmatprep.subr.bf16.mxu0 0
      %635 = vmatpush1.bf16.xpose.msra.mxu0 0
      %636 = vmatprep.subr.bf16.mxu0 0
      %637 = vmatpush1.bf16.xpose.msra.mxu0 0
      %638 = vmatprep.subr.bf16.mxu0 0
      %639 = vmatpush1.bf16.xpose.msra.mxu0 0
      %640 = vmatprep.subr.bf16.mxu0 0
      %641 = vmatpush1.bf16.xpose.msra.mxu0 0
      %642 = vmatprep.subr.bf16.mxu0 0
      %643 = vmatpush1.bf16.xpose.msra.mxu0 0
      %644 = vmatprep.subr.bf16.mxu0 0
      %645 = vmatpush1.bf16.xpose.msra.mxu0 0
      %646 = vmatprep.subr.bf16.mxu0 0
      %647 = vmatpush1.bf16.xpose.msra.mxu0 0
      %648 = vmatprep.subr.bf16.mxu0 0
      %649 = vmatpush1.bf16.xpose.msra.mxu0 0
      %650 = vmatprep.subr.bf16.mxu0 0
      %651 = vmatpush1.bf16.xpose.msra.mxu0 0
      %652 = vmatprep.subr.bf16.mxu0 0
      %653 = vmatpush1.bf16.xpose.msra.mxu0 0
      %654 = vmatprep.mubr.bf16.mxu0 0
      %655 = vmatmul.mubr.bf16.gmra.mrb[0].mxu0 %v617
      %v656 = vpop.f32.mrb[0].mxu0
      %v657 = vadd.f32 %v456, %v656
      %v658 = vpop.f32.mrb[0].mxu0
      %v659 = vpop.f32.mrb[0].mxu0
      %v660 = vadd.f32 %v457, %v659
      %v661 = vpop.f32.mrb[0].mxu0
      %662 = vdwg.mxu0
      %vm663 = vcmask 130048
      %v664 = vsel %vm663, %v507, -inf
      %665 = vmax.xlane.f32.xlu0 %v664
      %v666 = vpop.xlane.xlu0 %665
      %v667 = vsel %vm663, %v510, -inf
      %668 = vmax.xlane.f32.xlu0 %v667
      %v669 = vpop.xlane.xlu0 %668
      %v670 = vsel %vm663, %v557, -inf
      %671 = vmax.xlane.f32.xlu0 %v670
      %v672 = vpop.xlane.xlu0 %671
      %v673 = vsel %vm663, %v560, -inf
      %674 = vmax.xlane.f32.xlu0 %v673
      %v675 = vpop.xlane.xlu0 %674
      %v676 = vsel %vm663, %v607, -inf
      %677 = vmax.xlane.f32.xlu0 %v676
      %v678 = vpop.xlane.xlu0 %677
      %v679 = vsel %vm663, %v610, -inf
      %680 = vmax.xlane.f32.xlu0 %v679
      %v681 = vpop.xlane.xlu0 %680
      %v682 = vsel %vm663, %v657, -inf
      %683 = vmax.xlane.f32.xlu0 %v682
      %v684 = vpop.xlane.xlu0 %683
      %v685 = vsel %vm663, %v660, -inf
      %686 = vmax.xlane.f32.xlu0 %v685
      %v687 = vpop.xlane.xlu0 %686
      %v688 = vsub.f32 %v507, %v666
      %v689 = vsub.f32 %v510, %v669
      %v690 = vsub.f32 %v557, %v672
      %v691 = vsub.f32 %v560, %v675
      %v692 = vsub.f32 %v607, %v678
      %v693 = vsub.f32 %v610, %v681
      %v694 = vsub.f32 %v657, %v684
      %v695 = vsub.f32 %v660, %v687
      %v696 = vmul.f32 %v688, 1.442695
      %v697 = vpow.pop %v696
      %v698 = vmul.f32 %v689, 1.442695
      %v699 = vpow.pop %v698
      %v700 = vmul.f32 %v690, 1.442695
      %v701 = vpow.pop %v700
      %v702 = vmul.f32 %v691, 1.442695
      %v703 = vpow.pop %v702
      %v704 = vmul.f32 %v692, 1.442695
      %v705 = vpow.pop %v704
      %v706 = vmul.f32 %v693, 1.442695
      %v707 = vpow.pop %v706
      %v708 = vmul.f32 %v694, 1.442695
      %v709 = vpow.pop %v708
      %v710 = vmul.f32 %v695, 1.442695
      %v711 = vpow.pop %v710
      %v712 = vsel %vm663, %v697, 0.0
      %713 = vadd.xlane.f32.xlu0 %v712
      %v714 = vpop.xlane.xlu0 %713
      %v715 = vsel %vm663, %v699, 0.0
      %716 = vadd.xlane.f32.xlu0 %v715
      %v717 = vpop.xlane.xlu0 %716
      %v718 = vsel %vm663, %v701, 0.0
      %719 = vadd.xlane.f32.xlu0 %v718
      %v720 = vpop.xlane.xlu0 %719
      %v721 = vsel %vm663, %v703, 0.0
      %722 = vadd.xlane.f32.xlu0 %v721
      %v723 = vpop.xlane.xlu0 %722
      %v724 = vsel %vm663, %v705, 0.0
      %725 = vadd.xlane.f32.xlu0 %v724
      %v726 = vpop.xlane.xlu0 %725
      %v727 = vsel %vm663, %v707, 0.0
      %728 = vadd.xlane.f32.xlu0 %v727
      %v729 = vpop.xlane.xlu0 %728
      %v730 = vsel %vm663, %v709, 0.0
      %731 = vadd.xlane.f32.xlu0 %v730
      %v732 = vpop.xlane.xlu0 %731
      %v733 = vsel %vm663, %v711, 0.0
      %734 = vadd.xlane.f32.xlu0 %v733
      %v735 = vpop.xlane.xlu0 %734
      %v736 = vrcp.pop %v714
      %v737 = vrcp.pop %v717
      %v738 = vrcp.pop %v720
      %v739 = vrcp.pop %v723
      %v740 = vrcp.pop %v726
      %v741 = vrcp.pop %v729
      %v742 = vrcp.pop %v732
      %v743 = vrcp.pop %v735
      %v744 = vmul.f32 %v697, %v736
      %v745 = vmul.f32 %v699, %v737
      %v746 = vmul.f32 %v701, %v738
      %v747 = vmul.f32 %v703, %v739
      %v748 = vmul.f32 %v705, %v740
      %v749 = vmul.f32 %v707, %v741
      %v750 = vmul.f32 %v709, %v742
      %v751 = vmul.f32 %v711, %v743
      %v752 = vpack.c.bf16 %v745, %v744
      %v753 = vpack.c.bf16 %v747, %v746
      %v754 = vpack.c.bf16 %v749, %v748
      %v755 = vpack.c.bf16 %v751, %v750
      %756 = vrot.lane.b32.xlu0 %v446, 64
      %v757 = vpop.permute.xlu0 %756
      %v760 = vsel %vm663, %v752, 0
      %762 = vmatprep.subr.bf16.mxu0 0
      %763 = vmatpush1.bf16.msra.mxu0 %v757
      %764 = vmatprep.subr.bf16.mxu0 0
      %765 = vmatpush1.bf16.msra.mxu0 0
      %766 = vmatprep.subr.bf16.mxu0 0
      %767 = vmatpush1.bf16.msra.mxu0 0
      %768 = vmatprep.subr.bf16.mxu0 0
      %769 = vmatpush1.bf16.msra.mxu0 0
      %770 = vmatprep.subr.bf16.mxu0 0
      %771 = vmatpush1.bf16.msra.mxu0 0
      %772 = vmatprep.subr.bf16.mxu0 0
      %773 = vmatpush1.bf16.msra.mxu0 0
      %774 = vmatprep.subr.bf16.mxu0 0
      %775 = vmatpush1.bf16.msra.mxu0 0
      %776 = vmatprep.subr.bf16.mxu0 0
      %777 = vmatpush1.bf16.msra.mxu0 0
      %778 = vmatprep.subr.bf16.mxu0 0
      %779 = vmatpush1.bf16.msra.mxu0 0
      %780 = vmatprep.subr.bf16.mxu0 0
      %781 = vmatpush1.bf16.msra.mxu0 0
      %782 = vmatprep.subr.bf16.mxu0 0
      %783 = vmatpush1.bf16.msra.mxu0 0
      %784 = vmatprep.subr.bf16.mxu0 0
      %785 = vmatpush1.bf16.msra.mxu0 0
      %786 = vmatprep.subr.bf16.mxu0 0
      %787 = vmatpush1.bf16.msra.mxu0 0
      %788 = vmatprep.subr.bf16.mxu0 0
      %789 = vmatpush1.bf16.msra.mxu0 0
      %790 = vmatprep.subr.bf16.mxu0 0
      %791 = vmatpush1.bf16.msra.mxu0 0
      %792 = vmatprep.subr.bf16.mxu0 0
      %793 = vmatpush1.bf16.msra.mxu0 0
      %794 = vmatprep.mubr.bf16.mxu0 0
      %795 = vmatmul.mubr.bf16.gmra.mrb[0].mxu0 %v760
      %v796 = vpop.f32.mrb[0].mxu0
      %v797 = vadd.f32 0.0, %v796
      %v798 = vpop.f32.mrb[0].mxu0
      %v799 = vpop.f32.mrb[0].mxu0
      %v800 = vadd.f32 0.0, %v799
      %v801 = vpop.f32.mrb[0].mxu0
      %802 = vdwg.mxu0
      %803 = vrot.lane.b32.xlu0 %v447, 64
      %v804 = vpop.permute.xlu0 %803
      %v807 = vsel %vm663, %v753, 0
      %809 = vmatprep.subr.bf16.mxu0 0
      %810 = vmatpush1.bf16.msra.mxu0 %v804
      %811 = vmatprep.subr.bf16.mxu0 0
      %812 = vmatpush1.bf16.msra.mxu0 0
      %813 = vmatprep.subr.bf16.mxu0 0
      %814 = vmatpush1.bf16.msra.mxu0 0
      %815 = vmatprep.subr.bf16.mxu0 0
      %816 = vmatpush1.bf16.msra.mxu0 0
      %817 = vmatprep.subr.bf16.mxu0 0
      %818 = vmatpush1.bf16.msra.mxu0 0
      %819 = vmatprep.subr.bf16.mxu0 0
      %820 = vmatpush1.bf16.msra.mxu0 0
      %821 = vmatprep.subr.bf16.mxu0 0
      %822 = vmatpush1.bf16.msra.mxu0 0
      %823 = vmatprep.subr.bf16.mxu0 0
      %824 = vmatpush1.bf16.msra.mxu0 0
      %825 = vmatprep.subr.bf16.mxu0 0
      %826 = vmatpush1.bf16.msra.mxu0 0
      %827 = vmatprep.subr.bf16.mxu0 0
      %828 = vmatpush1.bf16.msra.mxu0 0
      %829 = vmatprep.subr.bf16.mxu0 0
      %830 = vmatpush1.bf16.msra.mxu0 0
      %831 = vmatprep.subr.bf16.mxu0 0
      %832 = vmatpush1.bf16.msra.mxu0 0
      %833 = vmatprep.subr.bf16.mxu0 0
      %834 = vmatpush1.bf16.msra.mxu0 0
      %835 = vmatprep.subr.bf16.mxu0 0
      %836 = vmatpush1.bf16.msra.mxu0 0
      %837 = vmatprep.subr.bf16.mxu0 0
      %838 = vmatpush1.bf16.msra.mxu0 0
      %839 = vmatprep.subr.bf16.mxu0 0
      %840 = vmatpush1.bf16.msra.mxu0 0
      %841 = vmatprep.mubr.bf16.mxu0 0
      %842 = vmatmul.mubr.bf16.gmra.mrb[0].mxu0 %v807
      %v843 = vpop.f32.mrb[0].mxu0
      %v844 = vadd.f32 0.0, %v843
      %v845 = vpop.f32.mrb[0].mxu0
      %v846 = vpop.f32.mrb[0].mxu0
      %v847 = vadd.f32 0.0, %v846
      %v848 = vpop.f32.mrb[0].mxu0
      %849 = vdwg.mxu0
      %850 = vrot.lane.b32.xlu0 %v448, 64
      %v851 = vpop.permute.xlu0 %850
      %v854 = vsel %vm663, %v754, 0
      %856 = vmatprep.subr.bf16.mxu0 0
      %857 = vmatpush1.bf16.msra.mxu0 %v851
      %858 = vmatprep.subr.bf16.mxu0 0
      %859 = vmatpush1.bf16.msra.mxu0 0
      %860 = vmatprep.subr.bf16.mxu0 0
      %861 = vmatpush1.bf16.msra.mxu0 0
      %862 = vmatprep.subr.bf16.mxu0 0
      %863 = vmatpush1.bf16.msra.mxu0 0
      %864 = vmatprep.subr.bf16.mxu0 0
      %865 = vmatpush1.bf16.msra.mxu0 0
      %866 = vmatprep.subr.bf16.mxu0 0
      %867 = vmatpush1.bf16.msra.mxu0 0
      %868 = vmatprep.subr.bf16.mxu0 0
      %869 = vmatpush1.bf16.msra.mxu0 0
      %870 = vmatprep.subr.bf16.mxu0 0
      %871 = vmatpush1.bf16.msra.mxu0 0
      %872 = vmatprep.subr.bf16.mxu0 0
      %873 = vmatpush1.bf16.msra.mxu0 0
      %874 = vmatprep.subr.bf16.mxu0 0
      %875 = vmatpush1.bf16.msra.mxu0 0
      %876 = vmatprep.subr.bf16.mxu0 0
      %877 = vmatpush1.bf16.msra.mxu0 0
      %878 = vmatprep.subr.bf16.mxu0 0
      %879 = vmatpush1.bf16.msra.mxu0 0
      %880 = vmatprep.subr.bf16.mxu0 0
      %881 = vmatpush1.bf16.msra.mxu0 0
      %882 = vmatprep.subr.bf16.mxu0 0
      %883 = vmatpush1.bf16.msra.mxu0 0
      %884 = vmatprep.subr.bf16.mxu0 0
      %885 = vmatpush1.bf16.msra.mxu0 0
      %886 = vmatprep.subr.bf16.mxu0 0
      %887 = vmatpush1.bf16.msra.mxu0 0
      %888 = vmatprep.mubr.bf16.mxu0 0
      %889 = vmatmul.mubr.bf16.gmra.mrb[0].mxu0 %v854
      %v890 = vpop.f32.mrb[0].mxu0
      %v891 = vadd.f32 0.0, %v890
      %v892 = vpop.f32.mrb[0].mxu0
      %v893 = vpop.f32.mrb[0].mxu0
      %v894 = vadd.f32 0.0, %v893
      %v895 = vpop.f32.mrb[0].mxu0
      %896 = vdwg.mxu0
      %897 = vrot.lane.b32.xlu0 %v449, 64
      %v898 = vpop.permute.xlu0 %897
      %v901 = vsel %vm663, %v755, 0
      %903 = vmatprep.subr.bf16.mxu0 0
      %904 = vmatpush1.bf16.msra.mxu0 %v898
      %905 = vmatprep.subr.bf16.mxu0 0
      %906 = vmatpush1.bf16.msra.mxu0 0
      %907 = vmatprep.subr.bf16.mxu0 0
      %908 = vmatpush1.bf16.msra.mxu0 0
      %909 = vmatprep.subr.bf16.mxu0 0
      %910 = vmatpush1.bf16.msra.mxu0 0
      %911 = vmatprep.subr.bf16.mxu0 0
      %912 = vmatpush1.bf16.msra.mxu0 0
      %913 = vmatprep.subr.bf16.mxu0 0
      %914 = vmatpush1.bf16.msra.mxu0 0
      %915 = vmatprep.subr.bf16.mxu0 0
      %916 = vmatpush1.bf16.msra.mxu0 0
      %917 = vmatprep.subr.bf16.mxu0 0
      %918 = vmatpush1.bf16.msra.mxu0 0
      %919 = vmatprep.subr.bf16.mxu0 0
      %920 = vmatpush1.bf16.msra.mxu0 0
      %921 = vmatprep.subr.bf16.mxu0 0
      %922 = vmatpush1.bf16.msra.mxu0 0
      %923 = vmatprep.subr.bf16.mxu0 0
      %924 = vmatpush1.bf16.msra.mxu0 0
      %925 = vmatprep.subr.bf16.mxu0 0
      %926 = vmatpush1.bf16.msra.mxu0 0
      %927 = vmatprep.subr.bf16.mxu0 0
      %928 = vmatpush1.bf16.msra.mxu0 0
      %929 = vmatprep.subr.bf16.mxu0 0
      %930 = vmatpush1.bf16.msra.mxu0 0
      %931 = vmatprep.subr.bf16.mxu0 0
      %932 = vmatpush1.bf16.msra.mxu0 0
      %933 = vmatprep.subr.bf16.mxu0 0
      %934 = vmatpush1.bf16.msra.mxu0 0
      %935 = vmatprep.mubr.bf16.mxu0 0
      %936 = vmatmul.mubr.bf16.gmra.mrb[0].mxu0 %v901
      %v937 = vpop.f32.mrb[0].mxu0
      %v938 = vadd.f32 0.0, %v937
      %v939 = vpop.f32.mrb[0].mxu0
      %v940 = vpop.f32.mrb[0].mxu0
      %v941 = vadd.f32 0.0, %v940
      %v942 = vpop.f32.mrb[0].mxu0
      %943 = vdwg.mxu0
      %v944 = vpack.c.bf16 %v800, %v797
      %v945 = vpack.c.bf16 %v847, %v844
      %v946 = vpack.c.bf16 %v894, %v891
      %v947 = vpack.c.bf16 %v941, %v938
      %948 = vrot.lane.b32.xlu0 %v446, 120
      %v949 = vpop.permute.xlu0 %948
      %950 = vrot.lane.b32.xlu0 %v446, 88
      %v951 = vpop.permute.xlu0 %950
      %v953 = vsel %vm465, %v949, 0
      %v956 = vsel %vm465, %v951, 0
      %958 = vmatprep.subr.bf16.mxu0 0
      %959 = vmatpush1.bf16.xpose.msra.mxu0 %v956
      %960 = vmatprep.subr.bf16.mxu0 0
      %961 = vmatpush1.bf16.xpose.msra.mxu0 0
      %962 = vmatprep.subr.bf16.mxu0 0
      %963 = vmatpush1.bf16.xpose.msra.mxu0 0
      %964 = vmatprep.subr.bf16.mxu0 0
      %965 = vmatpush1.bf16.xpose.msra.mxu0 0
      %966 = vmatprep.subr.bf16.mxu0 0
      %967 = vmatpush1.bf16.xpose.msra.mxu0 0
      %968 = vmatprep.subr.bf16.mxu0 0
      %969 = vmatpush1.bf16.xpose.msra.mxu0 0
      %970 = vmatprep.subr.bf16.mxu0 0
      %971 = vmatpush1.bf16.xpose.msra.mxu0 0
      %972 = vmatprep.subr.bf16.mxu0 0
      %973 = vmatpush1.bf16.xpose.msra.mxu0 0
      %974 = vmatprep.subr.bf16.mxu0 0
      %975 = vmatpush1.bf16.xpose.msra.mxu0 0
      %976 = vmatprep.subr.bf16.mxu0 0
      %977 = vmatpush1.bf16.xpose.msra.mxu0 0
      %978 = vmatprep.subr.bf16.mxu0 0
      %979 = vmatpush1.bf16.xpose.msra.mxu0 0
      %980 = vmatprep.subr.bf16.mxu0 0
      %981 = vmatpush1.bf16.xpose.msra.mxu0 0
      %982 = vmatprep.subr.bf16.mxu0 0
      %983 = vmatpush1.bf16.xpose.msra.mxu0 0
      %984 = vmatprep.subr.bf16.mxu0 0
      %985 = vmatpush1.bf16.xpose.msra.mxu0 0
      %986 = vmatprep.subr.bf16.mxu0 0
      %987 = vmatpush1.bf16.xpose.msra.mxu0 0
      %988 = vmatprep.subr.bf16.mxu0 0
      %989 = vmatpush1.bf16.xpose.msra.mxu0 0
      %990 = vmatprep.mubr.bf16.mxu0 0
      %991 = vmatmul.mubr.bf16.gmra.mrb[0].mxu0 %v953
      %v992 = vpop.f32.mrb[0].mxu0
      %v993 = vadd.f32 %v450, %v992
      %v994 = vpop.f32.mrb[0].mxu0
      %v995 = vpop.f32.mrb[0].mxu0
      %v996 = vadd.f32 %v451, %v995
      %v997 = vpop.f32.mrb[0].mxu0
      %998 = vdwg.mxu0
      %999 = vrot.lane.b32.xlu0 %v447, 120
      %v1000 = vpop.permute.xlu0 %999
      %1001 = vrot.lane.b32.xlu0 %v447, 88
      %v1002 = vpop.permute.xlu0 %1001
      %v1004 = vsel %vm465, %v1000, 0
      %v1007 = vsel %vm465, %v1002, 0
      %1009 = vmatprep.subr.bf16.mxu0 0
      %1010 = vmatpush1.bf16.xpose.msra.mxu0 %v1007
      %1011 = vmatprep.subr.bf16.mxu0 0
      %1012 = vmatpush1.bf16.xpose.msra.mxu0 0
      %1013 = vmatprep.subr.bf16.mxu0 0
      %1014 = vmatpush1.bf16.xpose.msra.mxu0 0
      %1015 = vmatprep.subr.bf16.mxu0 0
      %1016 = vmatpush1.bf16.xpose.msra.mxu0 0
      %1017 = vmatprep.subr.bf16.mxu0 0
      %1018 = vmatpush1.bf16.xpose.msra.mxu0 0
      %1019 = vmatprep.subr.bf16.mxu0 0
      %1020 = vmatpush1.bf16.xpose.msra.mxu0 0
      %1021 = vmatprep.subr.bf16.mxu0 0
      %1022 = vmatpush1.bf16.xpose.msra.mxu0 0
      %1023 = vmatprep.subr.bf16.mxu0 0
      %1024 = vmatpush1.bf16.xpose.msra.mxu0 0
      %1025 = vmatprep.subr.bf16.mxu0 0
      %1026 = vmatpush1.bf16.xpose.msra.mxu0 0
      %1027 = vmatprep.subr.bf16.mxu0 0
      %1028 = vmatpush1.bf16.xpose.msra.mxu0 0
      %1029 = vmatprep.subr.bf16.mxu0 0
      %1030 = vmatpush1.bf16.xpose.msra.mxu0 0
      %1031 = vmatprep.subr.bf16.mxu0 0
      %1032 = vmatpush1.bf16.xpose.msra.mxu0 0
      %1033 = vmatprep.subr.bf16.mxu0 0
      %1034 = vmatpush1.bf16.xpose.msra.mxu0 0
      %1035 = vmatprep.subr.bf16.mxu0 0
      %1036 = vmatpush1.bf16.xpose.msra.mxu0 0
      %1037 = vmatprep.subr.bf16.mxu0 0
      %1038 = vmatpush1.bf16.xpose.msra.mxu0 0
      %1039 = vmatprep.subr.bf16.mxu0 0
      %1040 = vmatpush1.bf16.xpose.msra.mxu0 0
      %1041 = vmatprep.mubr.bf16.mxu0 0
      %1042 = vmatmul.mubr.bf16.gmra.mrb[0].mxu0 %v1004
      %v1043 = vpop.f32.mrb[0].mxu0
      %v1044 = vadd.f32 %v452, %v1043
      %v1045 = vpop.f32.mrb[0].mxu0
      %v1046 = vpop.f32.mrb[0].mxu0
      %v1047 = vadd.f32 %v453, %v1046
      %v1048 = vpop.f32.mrb[0].mxu0
      %1049 = vdwg.mxu0
      %1050 = vrot.lane.b32.xlu0 %v448, 120
      %v1051 = vpop.permute.xlu0 %1050
      %1052 = vrot.lane.b32.xlu0 %v448, 88
      %v1053 = vpop.permute.xlu0 %1052
      %v1055 = vsel %vm465, %v1051, 0
      %v1058 = vsel %vm465, %v1053, 0
      %1060 = vmatprep.subr.bf16.mxu0 0
      %1061 = vmatpush1.bf16.xpose.msra.mxu0 %v1058
      %1062 = vmatprep.subr.bf16.mxu0 0
      %1063 = vmatpush1.bf16.xpose.msra.mxu0 0
      %1064 = vmatprep.subr.bf16.mxu0 0
      %1065 = vmatpush1.bf16.xpose.msra.mxu0 0
      %1066 = vmatprep.subr.bf16.mxu0 0
      %1067 = vmatpush1.bf16.xpose.msra.mxu0 0
      %1068 = vmatprep.subr.bf16.mxu0 0
      %1069 = vmatpush1.bf16.xpose.msra.mxu0 0
      %1070 = vmatprep.subr.bf16.mxu0 0
      %1071 = vmatpush1.bf16.xpose.msra.mxu0 0
      %1072 = vmatprep.subr.bf16.mxu0 0
      %1073 = vmatpush1.bf16.xpose.msra.mxu0 0
      %1074 = vmatprep.subr.bf16.mxu0 0
      %1075 = vmatpush1.bf16.xpose.msra.mxu0 0
      %1076 = vmatprep.subr.bf16.mxu0 0
      %1077 = vmatpush1.bf16.xpose.msra.mxu0 0
      %1078 = vmatprep.subr.bf16.mxu0 0
      %1079 = vmatpush1.bf16.xpose.msra.mxu0 0
      %1080 = vmatprep.subr.bf16.mxu0 0
      %1081 = vmatpush1.bf16.xpose.msra.mxu0 0
      %1082 = vmatprep.subr.bf16.mxu0 0
      %1083 = vmatpush1.bf16.xpose.msra.mxu0 0
      %1084 = vmatprep.subr.bf16.mxu0 0
      %1085 = vmatpush1.bf16.xpose.msra.mxu0 0
      %1086 = vmatprep.subr.bf16.mxu0 0
      %1087 = vmatpush1.bf16.xpose.msra.mxu0 0
      %1088 = vmatprep.subr.bf16.mxu0 0
      %1089 = vmatpush1.bf16.xpose.msra.mxu0 0
      %1090 = vmatprep.subr.bf16.mxu0 0
      %1091 = vmatpush1.bf16.xpose.msra.mxu0 0
      %1092 = vmatprep.mubr.bf16.mxu0 0
      %1093 = vmatmul.mubr.bf16.gmra.mrb[0].mxu0 %v1055
      %v1094 = vpop.f32.mrb[0].mxu0
      %v1095 = vadd.f32 %v454, %v1094
      %v1096 = vpop.f32.mrb[0].mxu0
      %v1097 = vpop.f32.mrb[0].mxu0
      %v1098 = vadd.f32 %v455, %v1097
      %v1099 = vpop.f32.mrb[0].mxu0
      %1100 = vdwg.mxu0
      %1101 = vrot.lane.b32.xlu0 %v449, 120
      %v1102 = vpop.permute.xlu0 %1101
      %1103 = vrot.lane.b32.xlu0 %v449, 88
      %v1104 = vpop.permute.xlu0 %1103
      %v1106 = vsel %vm465, %v1102, 0
      %v1109 = vsel %vm465, %v1104, 0
      %1111 = vmatprep.subr.bf16.mxu0 0
      %1112 = vmatpush1.bf16.xpose.msra.mxu0 %v1109
      %1113 = vmatprep.subr.bf16.mxu0 0
      %1114 = vmatpush1.bf16.xpose.msra.mxu0 0
      %1115 = vmatprep.subr.bf16.mxu0 0
      %1116 = vmatpush1.bf16.xpose.msra.mxu0 0
      %1117 = vmatprep.subr.bf16.mxu0 0
      %1118 = vmatpush1.bf16.xpose.msra.mxu0 0
      %1119 = vmatprep.subr.bf16.mxu0 0
      %1120 = vmatpush1.bf16.xpose.msra.mxu0 0
      %1121 = vmatprep.subr.bf16.mxu0 0
      %1122 = vmatpush1.bf16.xpose.msra.mxu0 0
      %1123 = vmatprep.subr.bf16.mxu0 0
      %1124 = vmatpush1.bf16.xpose.msra.mxu0 0
      %1125 = vmatprep.subr.bf16.mxu0 0
      %1126 = vmatpush1.bf16.xpose.msra.mxu0 0
      %1127 = vmatprep.subr.bf16.mxu0 0
      %1128 = vmatpush1.bf16.xpose.msra.mxu0 0
      %1129 = vmatprep.subr.bf16.mxu0 0
      %1130 = vmatpush1.bf16.xpose.msra.mxu0 0
      %1131 = vmatprep.subr.bf16.mxu0 0
      %1132 = vmatpush1.bf16.xpose.msra.mxu0 0
      %1133 = vmatprep.subr.bf16.mxu0 0
      %1134 = vmatpush1.bf16.xpose.msra.mxu0 0
      %1135 = vmatprep.subr.bf16.mxu0 0
      %1136 = vmatpush1.bf16.xpose.msra.mxu0 0
      %1137 = vmatprep.subr.bf16.mxu0 0
      %1138 = vmatpush1.bf16.xpose.msra.mxu0 0
      %1139 = vmatprep.subr.bf16.mxu0 0
      %1140 = vmatpush1.bf16.xpose.msra.mxu0 0
      %1141 = vmatprep.subr.bf16.mxu0 0
      %1142 = vmatpush1.bf16.xpose.msra.mxu0 0
      %1143 = vmatprep.mubr.bf16.mxu0 0
      %1144 = vmatmul.mubr.bf16.gmra.mrb[0].mxu0 %v1106
      %v1145 = vpop.f32.mrb[0].mxu0
      %v1146 = vadd.f32 %v456, %v1145
      %v1147 = vpop.f32.mrb[0].mxu0
      %v1148 = vpop.f32.mrb[0].mxu0
      %v1149 = vadd.f32 %v457, %v1148
      %v1150 = vpop.f32.mrb[0].mxu0
      %1151 = vdwg.mxu0
      %v1152 = vsel %vm663, %v993, -inf
      %1153 = vmax.xlane.f32.xlu0 %v1152
      %v1154 = vpop.xlane.xlu0 %1153
      %v1155 = vsel %vm663, %v996, -inf
      %1156 = vmax.xlane.f32.xlu0 %v1155
      %v1157 = vpop.xlane.xlu0 %1156
      %v1158 = vsel %vm663, %v1044, -inf
      %1159 = vmax.xlane.f32.xlu0 %v1158
      %v1160 = vpop.xlane.xlu0 %1159
      %v1161 = vsel %vm663, %v1047, -inf
      %1162 = vmax.xlane.f32.xlu0 %v1161
      %v1163 = vpop.xlane.xlu0 %1162
      %v1164 = vsel %vm663, %v1095, -inf
      %1165 = vmax.xlane.f32.xlu0 %v1164
      %v1166 = vpop.xlane.xlu0 %1165
      %v1167 = vsel %vm663, %v1098, -inf
      %1168 = vmax.xlane.f32.xlu0 %v1167
      %v1169 = vpop.xlane.xlu0 %1168
      %v1170 = vsel %vm663, %v1146, -inf
      %1171 = vmax.xlane.f32.xlu0 %v1170
      %v1172 = vpop.xlane.xlu0 %1171
      %v1173 = vsel %vm663, %v1149, -inf
      %1174 = vmax.xlane.f32.xlu0 %v1173
      %v1175 = vpop.xlane.xlu0 %1174
      %v1176 = vsub.f32 %v993, %v1154
      %v1177 = vsub.f32 %v996, %v1157
      %v1178 = vsub.f32 %v1044, %v1160
      %v1179 = vsub.f32 %v1047, %v1163
      %v1180 = vsub.f32 %v1095, %v1166
      %v1181 = vsub.f32 %v1098, %v1169
      %v1182 = vsub.f32 %v1146, %v1172
      %v1183 = vsub.f32 %v1149, %v1175
      %v1184 = vmul.f32 %v1176, 1.442695
      %v1185 = vpow.pop %v1184
      %v1186 = vmul.f32 %v1177, 1.442695
      %v1187 = vpow.pop %v1186
      %v1188 = vmul.f32 %v1178, 1.442695
      %v1189 = vpow.pop %v1188
      %v1190 = vmul.f32 %v1179, 1.442695
      %v1191 = vpow.pop %v1190
      %v1192 = vmul.f32 %v1180, 1.442695
      %v1193 = vpow.pop %v1192
      %v1194 = vmul.f32 %v1181, 1.442695
      %v1195 = vpow.pop %v1194
      %v1196 = vmul.f32 %v1182, 1.442695
      %v1197 = vpow.pop %v1196
      %v1198 = vmul.f32 %v1183, 1.442695
      %v1199 = vpow.pop %v1198
      %v1200 = vsel %vm663, %v1185, 0.0
      %1201 = vadd.xlane.f32.xlu0 %v1200
      %v1202 = vpop.xlane.xlu0 %1201
      %v1203 = vsel %vm663, %v1187, 0.0
      %1204 = vadd.xlane.f32.xlu0 %v1203
      %v1205 = vpop.xlane.xlu0 %1204
      %v1206 = vsel %vm663, %v1189, 0.0
      %1207 = vadd.xlane.f32.xlu0 %v1206
      %v1208 = vpop.xlane.xlu0 %1207
      %v1209 = vsel %vm663, %v1191, 0.0
      %1210 = vadd.xlane.f32.xlu0 %v1209
      %v1211 = vpop.xlane.xlu0 %1210
      %v1212 = vsel %vm663, %v1193, 0.0
      %1213 = vadd.xlane.f32.xlu0 %v1212
      %v1214 = vpop.xlane.xlu0 %1213
      %v1215 = vsel %vm663, %v1195, 0.0
      %1216 = vadd.xlane.f32.xlu0 %v1215
      %v1217 = vpop.xlane.xlu0 %1216
      %v1218 = vsel %vm663, %v1197, 0.0
      %1219 = vadd.xlane.f32.xlu0 %v1218
      %v1220 = vpop.xlane.xlu0 %1219
      %v1221 = vsel %vm663, %v1199, 0.0
      %1222 = vadd.xlane.f32.xlu0 %v1221
      %v1223 = vpop.xlane.xlu0 %1222
      %v1224 = vrcp.pop %v1202
      %v1225 = vrcp.pop %v1205
      %v1226 = vrcp.pop %v1208
      %v1227 = vrcp.pop %v1211
      %v1228 = vrcp.pop %v1214
      %v1229 = vrcp.pop %v1217
      %v1230 = vrcp.pop %v1220
      %v1231 = vrcp.pop %v1223
      %v1232 = vmul.f32 %v1185, %v1224
      %v1233 = vmul.f32 %v1187, %v1225
      %v1234 = vmul.f32 %v1189, %v1226
      %v1235 = vmul.f32 %v1191, %v1227
      %v1236 = vmul.f32 %v1193, %v1228
      %v1237 = vmul.f32 %v1195, %v1229
      %v1238 = vmul.f32 %v1197, %v1230
      %v1239 = vmul.f32 %v1199, %v1231
      %v1240 = vpack.c.bf16 %v1233, %v1232
      %v1241 = vpack.c.bf16 %v1235, %v1234
      %v1242 = vpack.c.bf16 %v1237, %v1236
      %v1243 = vpack.c.bf16 %v1239, %v1238
      %1244 = vrot.lane.b32.xlu0 %v446, 56
      %v1245 = vpop.permute.xlu0 %1244
      %v1248 = vsel %vm663, %v1240, 0
      %1250 = vmatprep.subr.bf16.mxu0 0
      %1251 = vmatpush1.bf16.msra.mxu0 %v1245
      %1252 = vmatprep.subr.bf16.mxu0 0
      %1253 = vmatpush1.bf16.msra.mxu0 0
      %1254 = vmatprep.subr.bf16.mxu0 0
      %1255 = vmatpush1.bf16.msra.mxu0 0
      %1256 = vmatprep.subr.bf16.mxu0 0
      %1257 = vmatpush1.bf16.msra.mxu0 0
      %1258 = vmatprep.subr.bf16.mxu0 0
      %1259 = vmatpush1.bf16.msra.mxu0 0
      %1260 = vmatprep.subr.bf16.mxu0 0
      %1261 = vmatpush1.bf16.msra.mxu0 0
      %1262 = vmatprep.subr.bf16.mxu0 0
      %1263 = vmatpush1.bf16.msra.mxu0 0
      %1264 = vmatprep.subr.bf16.mxu0 0
      %1265 = vmatpush1.bf16.msra.mxu0 0
      %1266 = vmatprep.subr.bf16.mxu0 0
      %1267 = vmatpush1.bf16.msra.mxu0 0
      %1268 = vmatprep.subr.bf16.mxu0 0
      %1269 = vmatpush1.bf16.msra.mxu0 0
      %1270 = vmatprep.subr.bf16.mxu0 0
      %1271 = vmatpush1.bf16.msra.mxu0 0
      %1272 = vmatprep.subr.bf16.mxu0 0
      %1273 = vmatpush1.bf16.msra.mxu0 0
      %1274 = vmatprep.subr.bf16.mxu0 0
      %1275 = vmatpush1.bf16.msra.mxu0 0
      %1276 = vmatprep.subr.bf16.mxu0 0
      %1277 = vmatpush1.bf16.msra.mxu0 0
      %1278 = vmatprep.subr.bf16.mxu0 0
      %1279 = vmatpush1.bf16.msra.mxu0 0
      %1280 = vmatprep.subr.bf16.mxu0 0
      %1281 = vmatpush1.bf16.msra.mxu0 0
      %1282 = vmatprep.mubr.bf16.mxu0 0
      %1283 = vmatmul.mubr.bf16.gmra.mrb[0].mxu0 %v1248
      %v1284 = vpop.f32.mrb[0].mxu0
      %v1285 = vadd.f32 0.0, %v1284
      %v1286 = vpop.f32.mrb[0].mxu0
      %v1287 = vpop.f32.mrb[0].mxu0
      %v1288 = vadd.f32 0.0, %v1287
      %v1289 = vpop.f32.mrb[0].mxu0
      %1290 = vdwg.mxu0
      %1291 = vrot.lane.b32.xlu0 %v447, 56
      %v1292 = vpop.permute.xlu0 %1291
      %v1295 = vsel %vm663, %v1241, 0
      %1297 = vmatprep.subr.bf16.mxu0 0
      %1298 = vmatpush1.bf16.msra.mxu0 %v1292
      %1299 = vmatprep.subr.bf16.mxu0 0
      %1300 = vmatpush1.bf16.msra.mxu0 0
      %1301 = vmatprep.subr.bf16.mxu0 0
      %1302 = vmatpush1.bf16.msra.mxu0 0
      %1303 = vmatprep.subr.bf16.mxu0 0
      %1304 = vmatpush1.bf16.msra.mxu0 0
      %1305 = vmatprep.subr.bf16.mxu0 0
      %1306 = vmatpush1.bf16.msra.mxu0 0
      %1307 = vmatprep.subr.bf16.mxu0 0
      %1308 = vmatpush1.bf16.msra.mxu0 0
      %1309 = vmatprep.subr.bf16.mxu0 0
      %1310 = vmatpush1.bf16.msra.mxu0 0
      %1311 = vmatprep.subr.bf16.mxu0 0
      %1312 = vmatpush1.bf16.msra.mxu0 0
      %1313 = vmatprep.subr.bf16.mxu0 0
      %1314 = vmatpush1.bf16.msra.mxu0 0
      %1315 = vmatprep.subr.bf16.mxu0 0
      %1316 = vmatpush1.bf16.msra.mxu0 0
      %1317 = vmatprep.subr.bf16.mxu0 0
      %1318 = vmatpush1.bf16.msra.mxu0 0
      %1319 = vmatprep.subr.bf16.mxu0 0
      %1320 = vmatpush1.bf16.msra.mxu0 0
      %1321 = vmatprep.subr.bf16.mxu0 0
      %1322 = vmatpush1.bf16.msra.mxu0 0
      %1323 = vmatprep.subr.bf16.mxu0 0
      %1324 = vmatpush1.bf16.msra.mxu0 0
      %1325 = vmatprep.subr.bf16.mxu0 0
      %1326 = vmatpush1.bf16.msra.mxu0 0
      %1327 = vmatprep.subr.bf16.mxu0 0
      %1328 = vmatpush1.bf16.msra.mxu0 0
      %1329 = vmatprep.mubr.bf16.mxu0 0
      %1330 = vmatmul.mubr.bf16.gmra.mrb[0].mxu0 %v1295
      %v1331 = vpop.f32.mrb[0].mxu0
      %v1332 = vadd.f32 0.0, %v1331
      %v1333 = vpop.f32.mrb[0].mxu0
      %v1334 = vpop.f32.mrb[0].mxu0
      %v1335 = vadd.f32 0.0, %v1334
      %v1336 = vpop.f32.mrb[0].mxu0
      %1337 = vdwg.mxu0
      %1338 = vrot.lane.b32.xlu0 %v448, 56
      %v1339 = vpop.permute.xlu0 %1338
      %v1342 = vsel %vm663, %v1242, 0
      %1344 = vmatprep.subr.bf16.mxu0 0
      %1345 = vmatpush1.bf16.msra.mxu0 %v1339
      %1346 = vmatprep.subr.bf16.mxu0 0
      %1347 = vmatpush1.bf16.msra.mxu0 0
      %1348 = vmatprep.subr.bf16.mxu0 0
      %1349 = vmatpush1.bf16.msra.mxu0 0
      %1350 = vmatprep.subr.bf16.mxu0 0
      %1351 = vmatpush1.bf16.msra.mxu0 0
      %1352 = vmatprep.subr.bf16.mxu0 0
      %1353 = vmatpush1.bf16.msra.mxu0 0
      %1354 = vmatprep.subr.bf16.mxu0 0
      %1355 = vmatpush1.bf16.msra.mxu0 0
      %1356 = vmatprep.subr.bf16.mxu0 0
      %1357 = vmatpush1.bf16.msra.mxu0 0
      %1358 = vmatprep.subr.bf16.mxu0 0
      %1359 = vmatpush1.bf16.msra.mxu0 0
      %1360 = vmatprep.subr.bf16.mxu0 0
      %1361 = vmatpush1.bf16.msra.mxu0 0
      %1362 = vmatprep.subr.bf16.mxu0 0
      %1363 = vmatpush1.bf16.msra.mxu0 0
      %1364 = vmatprep.subr.bf16.mxu0 0
      %1365 = vmatpush1.bf16.msra.mxu0 0
      %1366 = vmatprep.subr.bf16.mxu0 0
      %1367 = vmatpush1.bf16.msra.mxu0 0
      %1368 = vmatprep.subr.bf16.mxu0 0
      %1369 = vmatpush1.bf16.msra.mxu0 0
      %1370 = vmatprep.subr.bf16.mxu0 0
      %1371 = vmatpush1.bf16.msra.mxu0 0
      %1372 = vmatprep.subr.bf16.mxu0 0
      %1373 = vmatpush1.bf16.msra.mxu0 0
      %1374 = vmatprep.subr.bf16.mxu0 0
      %1375 = vmatpush1.bf16.msra.mxu0 0
      %1376 = vmatprep.mubr.bf16.mxu0 0
      %1377 = vmatmul.mubr.bf16.gmra.mrb[0].mxu0 %v1342
      %v1378 = vpop.f32.mrb[0].mxu0
      %v1379 = vadd.f32 0.0, %v1378
      %v1380 = vpop.f32.mrb[0].mxu0
      %v1381 = vpop.f32.mrb[0].mxu0
      %v1382 = vadd.f32 0.0, %v1381
      %v1383 = vpop.f32.mrb[0].mxu0
      %1384 = vdwg.mxu0
      %1385 = vrot.lane.b32.xlu0 %v449, 56
      %v1386 = vpop.permute.xlu0 %1385
      %v1389 = vsel %vm663, %v1243, 0
      %1391 = vmatprep.subr.bf16.mxu0 0
      %1392 = vmatpush1.bf16.msra.mxu0 %v1386
      %1393 = vmatprep.subr.bf16.mxu0 0
      %1394 = vmatpush1.bf16.msra.mxu0 0
      %1395 = vmatprep.subr.bf16.mxu0 0
      %1396 = vmatpush1.bf16.msra.mxu0 0
      %1397 = vmatprep.subr.bf16.mxu0 0
      %1398 = vmatpush1.bf16.msra.mxu0 0
      %1399 = vmatprep.subr.bf16.mxu0 0
      %1400 = vmatpush1.bf16.msra.mxu0 0
      %1401 = vmatprep.subr.bf16.mxu0 0
      %1402 = vmatpush1.bf16.msra.mxu0 0
      %1403 = vmatprep.subr.bf16.mxu0 0
      %1404 = vmatpush1.bf16.msra.mxu0 0
      %1405 = vmatprep.subr.bf16.mxu0 0
      %1406 = vmatpush1.bf16.msra.mxu0 0
      %1407 = vmatprep.subr.bf16.mxu0 0
      %1408 = vmatpush1.bf16.msra.mxu0 0
      %1409 = vmatprep.subr.bf16.mxu0 0
      %1410 = vmatpush1.bf16.msra.mxu0 0
      %1411 = vmatprep.subr.bf16.mxu0 0
      %1412 = vmatpush1.bf16.msra.mxu0 0
      %1413 = vmatprep.subr.bf16.mxu0 0
      %1414 = vmatpush1.bf16.msra.mxu0 0
      %1415 = vmatprep.subr.bf16.mxu0 0
      %1416 = vmatpush1.bf16.msra.mxu0 0
      %1417 = vmatprep.subr.bf16.mxu0 0
      %1418 = vmatpush1.bf16.msra.mxu0 0
      %1419 = vmatprep.subr.bf16.mxu0 0
      %1420 = vmatpush1.bf16.msra.mxu0 0
      %1421 = vmatprep.subr.bf16.mxu0 0
      %1422 = vmatpush1.bf16.msra.mxu0 0
      %1423 = vmatprep.mubr.bf16.mxu0 0
      %1424 = vmatmul.mubr.bf16.gmra.mrb[0].mxu0 %v1389
      %v1425 = vpop.f32.mrb[0].mxu0
      %v1426 = vadd.f32 0.0, %v1425
      %v1427 = vpop.f32.mrb[0].mxu0
      %v1428 = vpop.f32.mrb[0].mxu0
      %v1429 = vadd.f32 0.0, %v1428
      %v1430 = vpop.f32.mrb[0].mxu0
      %1431 = vdwg.mxu0
      %v1432 = vpack.c.bf16 %v1288, %v1285
      %v1433 = vpack.c.bf16 %v1335, %v1332
      %v1434 = vpack.c.bf16 %v1382, %v1379
      %v1435 = vpack.c.bf16 %v1429, %v1426
      %v1437 = vsel %vm465, %v1432, 0
      %v1440 = vsel %vm465, %v1433, 0
      %v1443 = vsel %vm465, %v1434, 0
      %v1446 = vsel %vm465, %v1435, 0
      %vm1448 = vcmask 1043456
      %v1450 = vsel %vm1448, %v459, 0
      %1452 = vmatprep.subr.bf16.mxu0 0
      %1453 = vmatpush1.bf16.msra.mxu0 %v1450
      %1454 = vmatprep.subr.bf16.mxu0 0
      %1455 = vmatpush1.bf16.msra.mxu0 0
      %1456 = vmatprep.subr.bf16.mxu0 0
      %1457 = vmatpush1.bf16.msra.mxu0 0
      %1458 = vmatprep.subr.bf16.mxu0 0
      %1459 = vmatpush1.bf16.msra.mxu0 0
      %1460 = vmatprep.subr.bf16.mxu0 0
      %1461 = vmatpush1.bf16.msra.mxu0 0
      %1462 = vmatprep.subr.bf16.mxu0 0
      %1463 = vmatpush1.bf16.msra.mxu0 0
      %1464 = vmatprep.subr.bf16.mxu0 0
      %1465 = vmatpush1.bf16.msra.mxu0 0
      %1466 = vmatprep.subr.bf16.mxu0 0
      %1467 = vmatpush1.bf16.msra.mxu0 0
      %1468 = vmatprep.subr.bf16.mxu0 0
      %1469 = vmatpush1.bf16.msra.mxu0 0
      %1470 = vmatprep.subr.bf16.mxu0 0
      %1471 = vmatpush1.bf16.msra.mxu0 0
      %1472 = vmatprep.subr.bf16.mxu0 0
      %1473 = vmatpush1.bf16.msra.mxu0 0
      %1474 = vmatprep.subr.bf16.mxu0 0
      %1475 = vmatpush1.bf16.msra.mxu0 0
      %1476 = vmatprep.subr.bf16.mxu0 0
      %1477 = vmatpush1.bf16.msra.mxu0 0
      %1478 = vmatprep.subr.bf16.mxu0 0
      %1479 = vmatpush1.bf16.msra.mxu0 0
      %1480 = vmatprep.subr.bf16.mxu0 0
      %1481 = vmatpush1.bf16.msra.mxu0 0
      %1482 = vmatprep.subr.bf16.mxu0 0
      %1483 = vmatpush1.bf16.msra.mxu0 0
      %1484 = vmatprep.mubr.bf16.mxu0 0
      %1485 = vmatmul.mubr.bf16.gmra.mrb[0].mxu0 %v1437
      %v1486 = vpop.f32.mrb[0].mxu0
      %v1487 = vadd.f32 0.0, %v1486
      %v1488 = vpop.f32.mrb[0].mxu0
      %v1489 = vpop.f32.mrb[0].mxu0
      %v1490 = vadd.f32 0.0, %v1489
      %v1491 = vpop.f32.mrb[0].mxu0
      %1492 = vmatprep.mubr.bf16.mxu0 0
      %1493 = vmatmul.mubr.bf16.gmra.mrb[0].mxu0 %v1440
      %v1494 = vpop.f32.mrb[0].mxu0
      %v1495 = vadd.f32 0.0, %v1494
      %v1496 = vpop.f32.mrb[0].mxu0
      %v1497 = vpop.f32.mrb[0].mxu0
      %v1498 = vadd.f32 0.0, %v1497
      %v1499 = vpop.f32.mrb[0].mxu0
      %1500 = vmatprep.mubr.bf16.mxu0 0
      %1501 = vmatmul.mubr.bf16.gmra.mrb[0].mxu0 %v1443
      %v1502 = vpop.f32.mrb[0].mxu0
      %v1503 = vadd.f32 0.0, %v1502
      %v1504 = vpop.f32.mrb[0].mxu0
      %v1505 = vpop.f32.mrb[0].mxu0
      %v1506 = vadd.f32 0.0, %v1505
      %v1507 = vpop.f32.mrb[0].mxu0
      %1508 = vmatprep.mubr.bf16.mxu0 0
      %1509 = vmatmul.mubr.bf16.gmra.mrb[0].mxu0 %v1446
      %v1510 = vpop.f32.mrb[0].mxu0
      %v1511 = vadd.f32 0.0, %v1510
      %v1512 = vpop.f32.mrb[0].mxu0
      %v1513 = vpop.f32.mrb[0].mxu0
      %v1514 = vadd.f32 0.0, %v1513
      %v1515 = vpop.f32.mrb[0].mxu0
      %1516 = vdwg.mxu0
      %v1518 = vsel %vm465, %v944, 0
      %v1521 = vsel %vm465, %v945, 0
      %v1524 = vsel %vm465, %v946, 0
      %v1527 = vsel %vm465, %v947, 0
      %v1530 = vsel %vm1448, %v458, 0
      %1532 = vmatprep.subr.bf16.mxu0 0
      %1533 = vmatpush1.bf16.msra.mxu0 %v1530
      %1534 = vmatprep.subr.bf16.mxu0 0
      %1535 = vmatpush1.bf16.msra.mxu0 0
      %1536 = vmatprep.subr.bf16.mxu0 0
      %1537 = vmatpush1.bf16.msra.mxu0 0
      %1538 = vmatprep.subr.bf16.mxu0 0
      %1539 = vmatpush1.bf16.msra.mxu0 0
      %1540 = vmatprep.subr.bf16.mxu0 0
      %1541 = vmatpush1.bf16.msra.mxu0 0
      %1542 = vmatprep.subr.bf16.mxu0 0
      %1543 = vmatpush1.bf16.msra.mxu0 0
      %1544 = vmatprep.subr.bf16.mxu0 0
      %1545 = vmatpush1.bf16.msra.mxu0 0
      %1546 = vmatprep.subr.bf16.mxu0 0
      %1547 = vmatpush1.bf16.msra.mxu0 0
      %1548 = vmatprep.subr.bf16.mxu0 0
      %1549 = vmatpush1.bf16.msra.mxu0 0
      %1550 = vmatprep.subr.bf16.mxu0 0
      %1551 = vmatpush1.bf16.msra.mxu0 0
      %1552 = vmatprep.subr.bf16.mxu0 0
      %1553 = vmatpush1.bf16.msra.mxu0 0
      %1554 = vmatprep.subr.bf16.mxu0 0
      %1555 = vmatpush1.bf16.msra.mxu0 0
      %1556 = vmatprep.subr.bf16.mxu0 0
      %1557 = vmatpush1.bf16.msra.mxu0 0
      %1558 = vmatprep.subr.bf16.mxu0 0
      %1559 = vmatpush1.bf16.msra.mxu0 0
      %1560 = vmatprep.subr.bf16.mxu0 0
      %1561 = vmatpush1.bf16.msra.mxu0 0
      %1562 = vmatprep.subr.bf16.mxu0 0
      %1563 = vmatpush1.bf16.msra.mxu0 0
      %1564 = vmatprep.mubr.bf16.mxu0 0
      %1565 = vmatmul.mubr.bf16.gmra.mrb[0].mxu0 %v1518
      %v1566 = vpop.f32.mrb[0].mxu0
      %v1567 = vadd.f32 %v1487, %v1566
      %v1568 = vpop.f32.mrb[0].mxu0
      %v1569 = vpop.f32.mrb[0].mxu0
      %v1570 = vadd.f32 %v1490, %v1569
      %v1571 = vpop.f32.mrb[0].mxu0
      %1572 = vmatprep.mubr.bf16.mxu0 0
      %1573 = vmatmul.mubr.bf16.gmra.mrb[0].mxu0 %v1521
      %v1574 = vpop.f32.mrb[0].mxu0
      %v1575 = vadd.f32 %v1495, %v1574
      %v1576 = vpop.f32.mrb[0].mxu0
      %v1577 = vpop.f32.mrb[0].mxu0
      %v1578 = vadd.f32 %v1498, %v1577
      %v1579 = vpop.f32.mrb[0].mxu0
      %1580 = vmatprep.mubr.bf16.mxu0 0
      %1581 = vmatmul.mubr.bf16.gmra.mrb[0].mxu0 %v1524
      %v1582 = vpop.f32.mrb[0].mxu0
      %v1583 = vadd.f32 %v1503, %v1582
      %v1584 = vpop.f32.mrb[0].mxu0
      %v1585 = vpop.f32.mrb[0].mxu0
      %v1586 = vadd.f32 %v1506, %v1585
      %v1587 = vpop.f32.mrb[0].mxu0
      %1588 = vmatprep.mubr.bf16.mxu0 0
      %1589 = vmatmul.mubr.bf16.gmra.mrb[0].mxu0 %v1527
      %v1590 = vpop.f32.mrb[0].mxu0
      %v1591 = vadd.f32 %v1511, %v1590
      %v1592 = vpop.f32.mrb[0].mxu0
      %v1593 = vpop.f32.mrb[0].mxu0
      %v1594 = vadd.f32 %v1514, %v1593
      %v1595 = vpop.f32.mrb[0].mxu0
      %1596 = vdwg.mxu0
      %1597 = vrot.lane.b32.xlu0 %v446, 112
      %v1598 = vpop.permute.xlu0 %1597
      %1599 = vrot.lane.b32.xlu0 %v446, 80
      %v1600 = vpop.permute.xlu0 %1599
      %v1602 = vsel %vm465, %v1598, 0
      %v1605 = vsel %vm465, %v1600, 0
      %1607 = vmatprep.subr.bf16.mxu0 0
      %1608 = vmatpush1.bf16.xpose.msra.mxu0 %v1605
      %1609 = vmatprep.subr.bf16.mxu0 0
      %1610 = vmatpush1.bf16.xpose.msra.mxu0 0
      %1611 = vmatprep.subr.bf16.mxu0 0
      %1612 = vmatpush1.bf16.xpose.msra.mxu0 0
      %1613 = vmatprep.subr.bf16.mxu0 0
      %1614 = vmatpush1.bf16.xpose.msra.mxu0 0
      %1615 = vmatprep.subr.bf16.mxu0 0
      %1616 = vmatpush1.bf16.xpose.msra.mxu0 0
      %1617 = vmatprep.subr.bf16.mxu0 0
      %1618 = vmatpush1.bf16.xpose.msra.mxu0 0
      %1619 = vmatprep.subr.bf16.mxu0 0
      %1620 = vmatpush1.bf16.xpose.msra.mxu0 0
      %1621 = vmatprep.subr.bf16.mxu0 0
      %1622 = vmatpush1.bf16.xpose.msra.mxu0 0
      %1623 = vmatprep.subr.bf16.mxu0 0
      %1624 = vmatpush1.bf16.xpose.msra.mxu0 0
      %1625 = vmatprep.subr.bf16.mxu0 0
      %1626 = vmatpush1.bf16.xpose.msra.mxu0 0
      %1627 = vmatprep.subr.bf16.mxu0 0
      %1628 = vmatpush1.bf16.xpose.msra.mxu0 0
      %1629 = vmatprep.subr.bf16.mxu0 0
      %1630 = vmatpush1.bf16.xpose.msra.mxu0 0
      %1631 = vmatprep.subr.bf16.mxu0 0
      %1632 = vmatpush1.bf16.xpose.msra.mxu0 0
      %1633 = vmatprep.subr.bf16.mxu0 0
      %1634 = vmatpush1.bf16.xpose.msra.mxu0 0
      %1635 = vmatprep.subr.bf16.mxu0 0
      %1636 = vmatpush1.bf16.xpose.msra.mxu0 0
      %1637 = vmatprep.subr.bf16.mxu0 0
      %1638 = vmatpush1.bf16.xpose.msra.mxu0 0
      %1639 = vmatprep.mubr.bf16.mxu0 0
      %1640 = vmatmul.mubr.bf16.gmra.mrb[0].mxu0 %v1602
      %v1641 = vpop.f32.mrb[0].mxu0
      %v1642 = vadd.f32 %v450, %v1641
      %v1643 = vpop.f32.mrb[0].mxu0
      %v1644 = vpop.f32.mrb[0].mxu0
      %v1645 = vadd.f32 %v451, %v1644
      %v1646 = vpop.f32.mrb[0].mxu0
      %1647 = vdwg.mxu0
      %1648 = vrot.lane.b32.xlu0 %v447, 112
      %v1649 = vpop.permute.xlu0 %1648
      %1650 = vrot.lane.b32.xlu0 %v447, 80
      %v1651 = vpop.permute.xlu0 %1650
      %v1653 = vsel %vm465, %v1649, 0
      %v1656 = vsel %vm465, %v1651, 0
      %1658 = vmatprep.subr.bf16.mxu0 0
      %1659 = vmatpush1.bf16.xpose.msra.mxu0 %v1656
      %1660 = vmatprep.subr.bf16.mxu0 0
      %1661 = vmatpush1.bf16.xpose.msra.mxu0 0
      %1662 = vmatprep.subr.bf16.mxu0 0
      %1663 = vmatpush1.bf16.xpose.msra.mxu0 0
      %1664 = vmatprep.subr.bf16.mxu0 0
      %1665 = vmatpush1.bf16.xpose.msra.mxu0 0
      %1666 = vmatprep.subr.bf16.mxu0 0
      %1667 = vmatpush1.bf16.xpose.msra.mxu0 0
      %1668 = vmatprep.subr.bf16.mxu0 0
      %1669 = vmatpush1.bf16.xpose.msra.mxu0 0
      %1670 = vmatprep.subr.bf16.mxu0 0
      %1671 = vmatpush1.bf16.xpose.msra.mxu0 0
      %1672 = vmatprep.subr.bf16.mxu0 0
      %1673 = vmatpush1.bf16.xpose.msra.mxu0 0
      %1674 = vmatprep.subr.bf16.mxu0 0
      %1675 = vmatpush1.bf16.xpose.msra.mxu0 0
      %1676 = vmatprep.subr.bf16.mxu0 0
      %1677 = vmatpush1.bf16.xpose.msra.mxu0 0
      %1678 = vmatprep.subr.bf16.mxu0 0
      %1679 = vmatpush1.bf16.xpose.msra.mxu0 0
      %1680 = vmatprep.subr.bf16.mxu0 0
      %1681 = vmatpush1.bf16.xpose.msra.mxu0 0
      %1682 = vmatprep.subr.bf16.mxu0 0
      %1683 = vmatpush1.bf16.xpose.msra.mxu0 0
      %1684 = vmatprep.subr.bf16.mxu0 0
      %1685 = vmatpush1.bf16.xpose.msra.mxu0 0
      %1686 = vmatprep.subr.bf16.mxu0 0
      %1687 = vmatpush1.bf16.xpose.msra.mxu0 0
      %1688 = vmatprep.subr.bf16.mxu0 0
      %1689 = vmatpush1.bf16.xpose.msra.mxu0 0
      %1690 = vmatprep.mubr.bf16.mxu0 0
      %1691 = vmatmul.mubr.bf16.gmra.mrb[0].mxu0 %v1653
      %v1692 = vpop.f32.mrb[0].mxu0
      %v1693 = vadd.f32 %v452, %v1692
      %v1694 = vpop.f32.mrb[0].mxu0
      %v1695 = vpop.f32.mrb[0].mxu0
      %v1696 = vadd.f32 %v453, %v1695
      %v1697 = vpop.f32.mrb[0].mxu0
      %1698 = vdwg.mxu0
      %1699 = vrot.lane.b32.xlu0 %v448, 112
      %v1700 = vpop.permute.xlu0 %1699
      %1701 = vrot.lane.b32.xlu0 %v448, 80
      %v1702 = vpop.permute.xlu0 %1701
      %v1704 = vsel %vm465, %v1700, 0
      %v1707 = vsel %vm465, %v1702, 0
      %1709 = vmatprep.subr.bf16.mxu0 0
      %1710 = vmatpush1.bf16.xpose.msra.mxu0 %v1707
      %1711 = vmatprep.subr.bf16.mxu0 0
      %1712 = vmatpush1.bf16.xpose.msra.mxu0 0
      %1713 = vmatprep.subr.bf16.mxu0 0
      %1714 = vmatpush1.bf16.xpose.msra.mxu0 0
      %1715 = vmatprep.subr.bf16.mxu0 0
      %1716 = vmatpush1.bf16.xpose.msra.mxu0 0
      %1717 = vmatprep.subr.bf16.mxu0 0
      %1718 = vmatpush1.bf16.xpose.msra.mxu0 0
      %1719 = vmatprep.subr.bf16.mxu0 0
      %1720 = vmatpush1.bf16.xpose.msra.mxu0 0
      %1721 = vmatprep.subr.bf16.mxu0 0
      %1722 = vmatpush1.bf16.xpose.msra.mxu0 0
      %1723 = vmatprep.subr.bf16.mxu0 0
      %1724 = vmatpush1.bf16.xpose.msra.mxu0 0
      %1725 = vmatprep.subr.bf16.mxu0 0
      %1726 = vmatpush1.bf16.xpose.msra.mxu0 0
      %1727 = vmatprep.subr.bf16.mxu0 0
      %1728 = vmatpush1.bf16.xpose.msra.mxu0 0
      %1729 = vmatprep.subr.bf16.mxu0 0
      %1730 = vmatpush1.bf16.xpose.msra.mxu0 0
      %1731 = vmatprep.subr.bf16.mxu0 0
      %1732 = vmatpush1.bf16.xpose.msra.mxu0 0
      %1733 = vmatprep.subr.bf16.mxu0 0
      %1734 = vmatpush1.bf16.xpose.msra.mxu0 0
      %1735 = vmatprep.subr.bf16.mxu0 0
      %1736 = vmatpush1.bf16.xpose.msra.mxu0 0
      %1737 = vmatprep.subr.bf16.mxu0 0
      %1738 = vmatpush1.bf16.xpose.msra.mxu0 0
      %1739 = vmatprep.subr.bf16.mxu0 0
      %1740 = vmatpush1.bf16.xpose.msra.mxu0 0
      %1741 = vmatprep.mubr.bf16.mxu0 0
      %1742 = vmatmul.mubr.bf16.gmra.mrb[0].mxu0 %v1704
      %v1743 = vpop.f32.mrb[0].mxu0
      %v1744 = vadd.f32 %v454, %v1743
      %v1745 = vpop.f32.mrb[0].mxu0
      %v1746 = vpop.f32.mrb[0].mxu0
      %v1747 = vadd.f32 %v455, %v1746
      %v1748 = vpop.f32.mrb[0].mxu0
      %1749 = vdwg.mxu0
      %1750 = vrot.lane.b32.xlu0 %v449, 112
      %v1751 = vpop.permute.xlu0 %1750
      %1752 = vrot.lane.b32.xlu0 %v449, 80
      %v1753 = vpop.permute.xlu0 %1752
      %v1755 = vsel %vm465, %v1751, 0
      %v1758 = vsel %vm465, %v1753, 0
      %1760 = vmatprep.subr.bf16.mxu0 0
      %1761 = vmatpush1.bf16.xpose.msra.mxu0 %v1758
      %1762 = vmatprep.subr.bf16.mxu0 0
      %1763 = vmatpush1.bf16.xpose.msra.mxu0 0
      %1764 = vmatprep.subr.bf16.mxu0 0
      %1765 = vmatpush1.bf16.xpose.msra.mxu0 0
      %1766 = vmatprep.subr.bf16.mxu0 0
      %1767 = vmatpush1.bf16.xpose.msra.mxu0 0
      %1768 = vmatprep.subr.bf16.mxu0 0
      %1769 = vmatpush1.bf16.xpose.msra.mxu0 0
      %1770 = vmatprep.subr.bf16.mxu0 0
      %1771 = vmatpush1.bf16.xpose.msra.mxu0 0
      %1772 = vmatprep.subr.bf16.mxu0 0
      %1773 = vmatpush1.bf16.xpose.msra.mxu0 0
      %1774 = vmatprep.subr.bf16.mxu0 0
      %1775 = vmatpush1.bf16.xpose.msra.mxu0 0
      %1776 = vmatprep.subr.bf16.mxu0 0
      %1777 = vmatpush1.bf16.xpose.msra.mxu0 0
      %1778 = vmatprep.subr.bf16.mxu0 0
      %1779 = vmatpush1.bf16.xpose.msra.mxu0 0
      %1780 = vmatprep.subr.bf16.mxu0 0
      %1781 = vmatpush1.bf16.xpose.msra.mxu0 0
      %1782 = vmatprep.subr.bf16.mxu0 0
      %1783 = vmatpush1.bf16.xpose.msra.mxu0 0
      %1784 = vmatprep.subr.bf16.mxu0 0
      %1785 = vmatpush1.bf16.xpose.msra.mxu0 0
      %1786 = vmatprep.subr.bf16.mxu0 0
      %1787 = vmatpush1.bf16.xpose.msra.mxu0 0
      %1788 = vmatprep.subr.bf16.mxu0 0
      %1789 = vmatpush1.bf16.xpose.msra.mxu0 0
      %1790 = vmatprep.subr.bf16.mxu0 0
      %1791 = vmatpush1.bf16.xpose.msra.mxu0 0
      %1792 = vmatprep.mubr.bf16.mxu0 0
      %1793 = vmatmul.mubr.bf16.gmra.mrb[0].mxu0 %v1755
      %v1794 = vpop.f32.mrb[0].mxu0
      %v1795 = vadd.f32 %v456, %v1794
      %v1796 = vpop.f32.mrb[0].mxu0
      %v1797 = vpop.f32.mrb[0].mxu0
      %v1798 = vadd.f32 %v457, %v1797
      %v1799 = vpop.f32.mrb[0].mxu0
      %1800 = vdwg.mxu0
      %v1801 = vsel %vm663, %v1642, -inf
      %1802 = vmax.xlane.f32.xlu0 %v1801
      %v1803 = vpop.xlane.xlu0 %1802
      %v1804 = vsel %vm663, %v1645, -inf
      %1805 = vmax.xlane.f32.xlu0 %v1804
      %v1806 = vpop.xlane.xlu0 %1805
      %v1807 = vsel %vm663, %v1693, -inf
      %1808 = vmax.xlane.f32.xlu0 %v1807
      %v1809 = vpop.xlane.xlu0 %1808
      %v1810 = vsel %vm663, %v1696, -inf
      %1811 = vmax.xlane.f32.xlu0 %v1810
      %v1812 = vpop.xlane.xlu0 %1811
      %v1813 = vsel %vm663, %v1744, -inf
      %1814 = vmax.xlane.f32.xlu0 %v1813
      %v1815 = vpop.xlane.xlu0 %1814
      %v1816 = vsel %vm663, %v1747, -inf
      %1817 = vmax.xlane.f32.xlu0 %v1816
      %v1818 = vpop.xlane.xlu0 %1817
      %v1819 = vsel %vm663, %v1795, -inf
      %1820 = vmax.xlane.f32.xlu0 %v1819
      %v1821 = vpop.xlane.xlu0 %1820
      %v1822 = vsel %vm663, %v1798, -inf
      %1823 = vmax.xlane.f32.xlu0 %v1822
      %v1824 = vpop.xlane.xlu0 %1823
      %v1825 = vsub.f32 %v1642, %v1803
      %v1826 = vsub.f32 %v1645, %v1806
      %v1827 = vsub.f32 %v1693, %v1809
      %v1828 = vsub.f32 %v1696, %v1812
      %v1829 = vsub.f32 %v1744, %v1815
      %v1830 = vsub.f32 %v1747, %v1818
      %v1831 = vsub.f32 %v1795, %v1821
      %v1832 = vsub.f32 %v1798, %v1824
      %v1833 = vmul.f32 %v1825, 1.442695
      %v1834 = vpow.pop %v1833
      %v1835 = vmul.f32 %v1826, 1.442695
      %v1836 = vpow.pop %v1835
      %v1837 = vmul.f32 %v1827, 1.442695
      %v1838 = vpow.pop %v1837
      %v1839 = vmul.f32 %v1828, 1.442695
      %v1840 = vpow.pop %v1839
      %v1841 = vmul.f32 %v1829, 1.442695
      %v1842 = vpow.pop %v1841
      %v1843 = vmul.f32 %v1830, 1.442695
      %v1844 = vpow.pop %v1843
      %v1845 = vmul.f32 %v1831, 1.442695
      %v1846 = vpow.pop %v1845
      %v1847 = vmul.f32 %v1832, 1.442695
      %v1848 = vpow.pop %v1847
      %v1849 = vsel %vm663, %v1834, 0.0
      %1850 = vadd.xlane.f32.xlu0 %v1849
      %v1851 = vpop.xlane.xlu0 %1850
      %v1852 = vsel %vm663, %v1836, 0.0
      %1853 = vadd.xlane.f32.xlu0 %v1852
      %v1854 = vpop.xlane.xlu0 %1853
      %v1855 = vsel %vm663, %v1838, 0.0
      %1856 = vadd.xlane.f32.xlu0 %v1855
      %v1857 = vpop.xlane.xlu0 %1856
      %v1858 = vsel %vm663, %v1840, 0.0
      %1859 = vadd.xlane.f32.xlu0 %v1858
      %v1860 = vpop.xlane.xlu0 %1859
      %v1861 = vsel %vm663, %v1842, 0.0
      %1862 = vadd.xlane.f32.xlu0 %v1861
      %v1863 = vpop.xlane.xlu0 %1862
      %v1864 = vsel %vm663, %v1844, 0.0
      %1865 = vadd.xlane.f32.xlu0 %v1864
      %v1866 = vpop.xlane.xlu0 %1865
      %v1867 = vsel %vm663, %v1846, 0.0
      %1868 = vadd.xlane.f32.xlu0 %v1867
      %v1869 = vpop.xlane.xlu0 %1868
      %v1870 = vsel %vm663, %v1848, 0.0
      %1871 = vadd.xlane.f32.xlu0 %v1870
      %v1872 = vpop.xlane.xlu0 %1871
      %v1873 = vrcp.pop %v1851
      %v1874 = vrcp.pop %v1854
      %v1875 = vrcp.pop %v1857
      %v1876 = vrcp.pop %v1860
      %v1877 = vrcp.pop %v1863
      %v1878 = vrcp.pop %v1866
      %v1879 = vrcp.pop %v1869
      %v1880 = vrcp.pop %v1872
      %v1881 = vmul.f32 %v1834, %v1873
      %v1882 = vmul.f32 %v1836, %v1874
      %v1883 = vmul.f32 %v1838, %v1875
      %v1884 = vmul.f32 %v1840, %v1876
      %v1885 = vmul.f32 %v1842, %v1877
      %v1886 = vmul.f32 %v1844, %v1878
      %v1887 = vmul.f32 %v1846, %v1879
      %v1888 = vmul.f32 %v1848, %v1880
      %v1889 = vpack.c.bf16 %v1882, %v1881
      %v1890 = vpack.c.bf16 %v1884, %v1883
      %v1891 = vpack.c.bf16 %v1886, %v1885
      %v1892 = vpack.c.bf16 %v1888, %v1887
      %1893 = vrot.lane.b32.xlu0 %v446, 48
      %v1894 = vpop.permute.xlu0 %1893
      %v1897 = vsel %vm663, %v1889, 0
      %1899 = vmatprep.subr.bf16.mxu0 0
      %1900 = vmatpush1.bf16.msra.mxu0 %v1894
      %1901 = vmatprep.subr.bf16.mxu0 0
      %1902 = vmatpush1.bf16.msra.mxu0 0
      %1903 = vmatprep.subr.bf16.mxu0 0
      %1904 = vmatpush1.bf16.msra.mxu0 0
      %1905 = vmatprep.subr.bf16.mxu0 0
      %1906 = vmatpush1.bf16.msra.mxu0 0
      %1907 = vmatprep.subr.bf16.mxu0 0
      %1908 = vmatpush1.bf16.msra.mxu0 0
      %1909 = vmatprep.subr.bf16.mxu0 0
      %1910 = vmatpush1.bf16.msra.mxu0 0
      %1911 = vmatprep.subr.bf16.mxu0 0
      %1912 = vmatpush1.bf16.msra.mxu0 0
      %1913 = vmatprep.subr.bf16.mxu0 0
      %1914 = vmatpush1.bf16.msra.mxu0 0
      %1915 = vmatprep.subr.bf16.mxu0 0
      %1916 = vmatpush1.bf16.msra.mxu0 0
      %1917 = vmatprep.subr.bf16.mxu0 0
      %1918 = vmatpush1.bf16.msra.mxu0 0
      %1919 = vmatprep.subr.bf16.mxu0 0
      %1920 = vmatpush1.bf16.msra.mxu0 0
      %1921 = vmatprep.subr.bf16.mxu0 0
      %1922 = vmatpush1.bf16.msra.mxu0 0
      %1923 = vmatprep.subr.bf16.mxu0 0
      %1924 = vmatpush1.bf16.msra.mxu0 0
      %1925 = vmatprep.subr.bf16.mxu0 0
      %1926 = vmatpush1.bf16.msra.mxu0 0
      %1927 = vmatprep.subr.bf16.mxu0 0
      %1928 = vmatpush1.bf16.msra.mxu0 0
      %1929 = vmatprep.subr.bf16.mxu0 0
      %1930 = vmatpush1.bf16.msra.mxu0 0
      %1931 = vmatprep.mubr.bf16.mxu0 0
      %1932 = vmatmul.mubr.bf16.gmra.mrb[0].mxu0 %v1897
      %v1933 = vpop.f32.mrb[0].mxu0
      %v1934 = vadd.f32 0.0, %v1933
      %v1935 = vpop.f32.mrb[0].mxu0
      %v1936 = vpop.f32.mrb[0].mxu0
      %v1937 = vadd.f32 0.0, %v1936
      %v1938 = vpop.f32.mrb[0].mxu0
      %1939 = vdwg.mxu0
      %1940 = vrot.lane.b32.xlu0 %v447, 48
      %v1941 = vpop.permute.xlu0 %1940
      %v1944 = vsel %vm663, %v1890, 0
      %1946 = vmatprep.subr.bf16.mxu0 0
      %1947 = vmatpush1.bf16.msra.mxu0 %v1941
      %1948 = vmatprep.subr.bf16.mxu0 0
      %1949 = vmatpush1.bf16.msra.mxu0 0
      %1950 = vmatprep.subr.bf16.mxu0 0
      %1951 = vmatpush1.bf16.msra.mxu0 0
      %1952 = vmatprep.subr.bf16.mxu0 0
      %1953 = vmatpush1.bf16.msra.mxu0 0
      %1954 = vmatprep.subr.bf16.mxu0 0
      %1955 = vmatpush1.bf16.msra.mxu0 0
      %1956 = vmatprep.subr.bf16.mxu0 0
      %1957 = vmatpush1.bf16.msra.mxu0 0
      %1958 = vmatprep.subr.bf16.mxu0 0
      %1959 = vmatpush1.bf16.msra.mxu0 0
      %1960 = vmatprep.subr.bf16.mxu0 0
      %1961 = vmatpush1.bf16.msra.mxu0 0
      %1962 = vmatprep.subr.bf16.mxu0 0
      %1963 = vmatpush1.bf16.msra.mxu0 0
      %1964 = vmatprep.subr.bf16.mxu0 0
      %1965 = vmatpush1.bf16.msra.mxu0 0
      %1966 = vmatprep.subr.bf16.mxu0 0
      %1967 = vmatpush1.bf16.msra.mxu0 0
      %1968 = vmatprep.subr.bf16.mxu0 0
      %1969 = vmatpush1.bf16.msra.mxu0 0
      %1970 = vmatprep.subr.bf16.mxu0 0
      %1971 = vmatpush1.bf16.msra.mxu0 0
      %1972 = vmatprep.subr.bf16.mxu0 0
      %1973 = vmatpush1.bf16.msra.mxu0 0
      %1974 = vmatprep.subr.bf16.mxu0 0
      %1975 = vmatpush1.bf16.msra.mxu0 0
      %1976 = vmatprep.subr.bf16.mxu0 0
      %1977 = vmatpush1.bf16.msra.mxu0 0
      %1978 = vmatprep.mubr.bf16.mxu0 0
      %1979 = vmatmul.mubr.bf16.gmra.mrb[0].mxu0 %v1944
      %v1980 = vpop.f32.mrb[0].mxu0
      %v1981 = vadd.f32 0.0, %v1980
      %v1982 = vpop.f32.mrb[0].mxu0
      %v1983 = vpop.f32.mrb[0].mxu0
      %v1984 = vadd.f32 0.0, %v1983
      %v1985 = vpop.f32.mrb[0].mxu0
      %1986 = vdwg.mxu0
      %1987 = vrot.lane.b32.xlu0 %v448, 48
      %v1988 = vpop.permute.xlu0 %1987
      %v1991 = vsel %vm663, %v1891, 0
      %1993 = vmatprep.subr.bf16.mxu0 0
      %1994 = vmatpush1.bf16.msra.mxu0 %v1988
      %1995 = vmatprep.subr.bf16.mxu0 0
      %1996 = vmatpush1.bf16.msra.mxu0 0
      %1997 = vmatprep.subr.bf16.mxu0 0
      %1998 = vmatpush1.bf16.msra.mxu0 0
      %1999 = vmatprep.subr.bf16.mxu0 0
      %2000 = vmatpush1.bf16.msra.mxu0 0
      %2001 = vmatprep.subr.bf16.mxu0 0
      %2002 = vmatpush1.bf16.msra.mxu0 0
      %2003 = vmatprep.subr.bf16.mxu0 0
      %2004 = vmatpush1.bf16.msra.mxu0 0
      %2005 = vmatprep.subr.bf16.mxu0 0
      %2006 = vmatpush1.bf16.msra.mxu0 0
      %2007 = vmatprep.subr.bf16.mxu0 0
      %2008 = vmatpush1.bf16.msra.mxu0 0
      %2009 = vmatprep.subr.bf16.mxu0 0
      %2010 = vmatpush1.bf16.msra.mxu0 0
      %2011 = vmatprep.subr.bf16.mxu0 0
      %2012 = vmatpush1.bf16.msra.mxu0 0
      %2013 = vmatprep.subr.bf16.mxu0 0
      %2014 = vmatpush1.bf16.msra.mxu0 0
      %2015 = vmatprep.subr.bf16.mxu0 0
      %2016 = vmatpush1.bf16.msra.mxu0 0
      %2017 = vmatprep.subr.bf16.mxu0 0
      %2018 = vmatpush1.bf16.msra.mxu0 0
      %2019 = vmatprep.subr.bf16.mxu0 0
      %2020 = vmatpush1.bf16.msra.mxu0 0
      %2021 = vmatprep.subr.bf16.mxu0 0
      %2022 = vmatpush1.bf16.msra.mxu0 0
      %2023 = vmatprep.subr.bf16.mxu0 0
      %2024 = vmatpush1.bf16.msra.mxu0 0
      %2025 = vmatprep.mubr.bf16.mxu0 0
      %2026 = vmatmul.mubr.bf16.gmra.mrb[0].mxu0 %v1991
      %v2027 = vpop.f32.mrb[0].mxu0
      %v2028 = vadd.f32 0.0, %v2027
      %v2029 = vpop.f32.mrb[0].mxu0
      %v2030 = vpop.f32.mrb[0].mxu0
      %v2031 = vadd.f32 0.0, %v2030
      %v2032 = vpop.f32.mrb[0].mxu0
      %2033 = vdwg.mxu0
      %2034 = vrot.lane.b32.xlu0 %v449, 48
      %v2035 = vpop.permute.xlu0 %2034
      %v2038 = vsel %vm663, %v1892, 0
      %2040 = vmatprep.subr.bf16.mxu0 0
      %2041 = vmatpush1.bf16.msra.mxu0 %v2035
      %2042 = vmatprep.subr.bf16.mxu0 0
      %2043 = vmatpush1.bf16.msra.mxu0 0
      %2044 = vmatprep.subr.bf16.mxu0 0
      %2045 = vmatpush1.bf16.msra.mxu0 0
      %2046 = vmatprep.subr.bf16.mxu0 0
      %2047 = vmatpush1.bf16.msra.mxu0 0
      %2048 = vmatprep.subr.bf16.mxu0 0
      %2049 = vmatpush1.bf16.msra.mxu0 0
      %2050 = vmatprep.subr.bf16.mxu0 0
      %2051 = vmatpush1.bf16.msra.mxu0 0
      %2052 = vmatprep.subr.bf16.mxu0 0
      %2053 = vmatpush1.bf16.msra.mxu0 0
      %2054 = vmatprep.subr.bf16.mxu0 0
      %2055 = vmatpush1.bf16.msra.mxu0 0
      %2056 = vmatprep.subr.bf16.mxu0 0
      %2057 = vmatpush1.bf16.msra.mxu0 0
      %2058 = vmatprep.subr.bf16.mxu0 0
      %2059 = vmatpush1.bf16.msra.mxu0 0
      %2060 = vmatprep.subr.bf16.mxu0 0
      %2061 = vmatpush1.bf16.msra.mxu0 0
      %2062 = vmatprep.subr.bf16.mxu0 0
      %2063 = vmatpush1.bf16.msra.mxu0 0
      %2064 = vmatprep.subr.bf16.mxu0 0
      %2065 = vmatpush1.bf16.msra.mxu0 0
      %2066 = vmatprep.subr.bf16.mxu0 0
      %2067 = vmatpush1.bf16.msra.mxu0 0
      %2068 = vmatprep.subr.bf16.mxu0 0
      %2069 = vmatpush1.bf16.msra.mxu0 0
      %2070 = vmatprep.subr.bf16.mxu0 0
      %2071 = vmatpush1.bf16.msra.mxu0 0
      %2072 = vmatprep.mubr.bf16.mxu0 0
      %2073 = vmatmul.mubr.bf16.gmra.mrb[0].mxu0 %v2038
      %v2074 = vpop.f32.mrb[0].mxu0
      %v2075 = vadd.f32 0.0, %v2074
      %v2076 = vpop.f32.mrb[0].mxu0
      %v2077 = vpop.f32.mrb[0].mxu0
      %v2078 = vadd.f32 0.0, %v2077
      %v2079 = vpop.f32.mrb[0].mxu0
      %2080 = vdwg.mxu0
      %v2081 = vpack.c.bf16 %v1937, %v1934
      %v2082 = vpack.c.bf16 %v1984, %v1981
      %v2083 = vpack.c.bf16 %v2031, %v2028
      %v2084 = vpack.c.bf16 %v2078, %v2075
      %v2086 = vsel %vm465, %v2081, 0
      %v2089 = vsel %vm465, %v2082, 0
      %v2092 = vsel %vm465, %v2083, 0
      %v2095 = vsel %vm465, %v2084, 0
      %v2098 = vsel %vm1448, %v460, 0
      %2100 = vmatprep.subr.bf16.mxu0 0
      %2101 = vmatpush1.bf16.msra.mxu0 %v2098
      %2102 = vmatprep.subr.bf16.mxu0 0
      %2103 = vmatpush1.bf16.msra.mxu0 0
      %2104 = vmatprep.subr.bf16.mxu0 0
      %2105 = vmatpush1.bf16.msra.mxu0 0
      %2106 = vmatprep.subr.bf16.mxu0 0
      %2107 = vmatpush1.bf16.msra.mxu0 0
      %2108 = vmatprep.subr.bf16.mxu0 0
      %2109 = vmatpush1.bf16.msra.mxu0 0
      %2110 = vmatprep.subr.bf16.mxu0 0
      %2111 = vmatpush1.bf16.msra.mxu0 0
      %2112 = vmatprep.subr.bf16.mxu0 0
      %2113 = vmatpush1.bf16.msra.mxu0 0
      %2114 = vmatprep.subr.bf16.mxu0 0
      %2115 = vmatpush1.bf16.msra.mxu0 0
      %2116 = vmatprep.subr.bf16.mxu0 0
      %2117 = vmatpush1.bf16.msra.mxu0 0
      %2118 = vmatprep.subr.bf16.mxu0 0
      %2119 = vmatpush1.bf16.msra.mxu0 0
      %2120 = vmatprep.subr.bf16.mxu0 0
      %2121 = vmatpush1.bf16.msra.mxu0 0
      %2122 = vmatprep.subr.bf16.mxu0 0
      %2123 = vmatpush1.bf16.msra.mxu0 0
      %2124 = vmatprep.subr.bf16.mxu0 0
      %2125 = vmatpush1.bf16.msra.mxu0 0
      %2126 = vmatprep.subr.bf16.mxu0 0
      %2127 = vmatpush1.bf16.msra.mxu0 0
      %2128 = vmatprep.subr.bf16.mxu0 0
      %2129 = vmatpush1.bf16.msra.mxu0 0
      %2130 = vmatprep.subr.bf16.mxu0 0
      %2131 = vmatpush1.bf16.msra.mxu0 0
      %2132 = vmatprep.mubr.bf16.mxu0 0
      %2133 = vmatmul.mubr.bf16.gmra.mrb[0].mxu0 %v2086
      %v2134 = vpop.f32.mrb[0].mxu0
      %v2135 = vadd.f32 0.0, %v2134
      %v2136 = vpop.f32.mrb[0].mxu0
      %v2137 = vpop.f32.mrb[0].mxu0
      %v2138 = vadd.f32 0.0, %v2137
      %v2139 = vpop.f32.mrb[0].mxu0
      %2140 = vmatprep.mubr.bf16.mxu0 0
      %2141 = vmatmul.mubr.bf16.gmra.mrb[0].mxu0 %v2089
      %v2142 = vpop.f32.mrb[0].mxu0
      %v2143 = vadd.f32 0.0, %v2142
      %v2144 = vpop.f32.mrb[0].mxu0
      %v2145 = vpop.f32.mrb[0].mxu0
      %v2146 = vadd.f32 0.0, %v2145
      %v2147 = vpop.f32.mrb[0].mxu0
      %2148 = vmatprep.mubr.bf16.mxu0 0
      %2149 = vmatmul.mubr.bf16.gmra.mrb[0].mxu0 %v2092
      %v2150 = vpop.f32.mrb[0].mxu0
      %v2151 = vadd.f32 0.0, %v2150
      %v2152 = vpop.f32.mrb[0].mxu0
      %v2153 = vpop.f32.mrb[0].mxu0
      %v2154 = vadd.f32 0.0, %v2153
      %v2155 = vpop.f32.mrb[0].mxu0
      %2156 = vmatprep.mubr.bf16.mxu0 0
      %2157 = vmatmul.mubr.bf16.gmra.mrb[0].mxu0 %v2095
      %v2158 = vpop.f32.mrb[0].mxu0
      %v2159 = vadd.f32 0.0, %v2158
      %v2160 = vpop.f32.mrb[0].mxu0
      %v2161 = vpop.f32.mrb[0].mxu0
      %v2162 = vadd.f32 0.0, %v2161
      %v2163 = vpop.f32.mrb[0].mxu0
      %2164 = vdwg.mxu0
      %v2165 = vadd.f32 %v1567, %v2135
      %v2166 = vadd.f32 %v1570, %v2138
      %v2167 = vadd.f32 %v1575, %v2143
      %v2168 = vadd.f32 %v1578, %v2146
      %v2169 = vadd.f32 %v1583, %v2151
      %v2170 = vadd.f32 %v1586, %v2154
      %v2171 = vadd.f32 %v1591, %v2159
      %v2172 = vadd.f32 %v1594, %v2162
      %2173 = vrot.lane.b32.xlu0 %v446, 104
      %v2174 = vpop.permute.xlu0 %2173
      %2175 = vrot.lane.b32.xlu0 %v446, 72
      %v2176 = vpop.permute.xlu0 %2175
      %v2178 = vsel %vm465, %v2174, 0
      %v2181 = vsel %vm465, %v2176, 0
      %2183 = vmatprep.subr.bf16.mxu0 0
      %2184 = vmatpush1.bf16.xpose.msra.mxu0 %v2181
      %2185 = vmatprep.subr.bf16.mxu0 0
      %2186 = vmatpush1.bf16.xpose.msra.mxu0 0
      %2187 = vmatprep.subr.bf16.mxu0 0
      %2188 = vmatpush1.bf16.xpose.msra.mxu0 0
      %2189 = vmatprep.subr.bf16.mxu0 0
      %2190 = vmatpush1.bf16.xpose.msra.mxu0 0
      %2191 = vmatprep.subr.bf16.mxu0 0
      %2192 = vmatpush1.bf16.xpose.msra.mxu0 0
      %2193 = vmatprep.subr.bf16.mxu0 0
      %2194 = vmatpush1.bf16.xpose.msra.mxu0 0
      %2195 = vmatprep.subr.bf16.mxu0 0
      %2196 = vmatpush1.bf16.xpose.msra.mxu0 0
      %2197 = vmatprep.subr.bf16.mxu0 0
      %2198 = vmatpush1.bf16.xpose.msra.mxu0 0
      %2199 = vmatprep.subr.bf16.mxu0 0
      %2200 = vmatpush1.bf16.xpose.msra.mxu0 0
      %2201 = vmatprep.subr.bf16.mxu0 0
      %2202 = vmatpush1.bf16.xpose.msra.mxu0 0
      %2203 = vmatprep.subr.bf16.mxu0 0
      %2204 = vmatpush1.bf16.xpose.msra.mxu0 0
      %2205 = vmatprep.subr.bf16.mxu0 0
      %2206 = vmatpush1.bf16.xpose.msra.mxu0 0
      %2207 = vmatprep.subr.bf16.mxu0 0
      %2208 = vmatpush1.bf16.xpose.msra.mxu0 0
      %2209 = vmatprep.subr.bf16.mxu0 0
      %2210 = vmatpush1.bf16.xpose.msra.mxu0 0
      %2211 = vmatprep.subr.bf16.mxu0 0
      %2212 = vmatpush1.bf16.xpose.msra.mxu0 0
      %2213 = vmatprep.subr.bf16.mxu0 0
      %2214 = vmatpush1.bf16.xpose.msra.mxu0 0
      %2215 = vmatprep.mubr.bf16.mxu0 0
      %2216 = vmatmul.mubr.bf16.gmra.mrb[0].mxu0 %v2178
      %v2217 = vpop.f32.mrb[0].mxu0
      %v2218 = vadd.f32 %v450, %v2217
      %v2219 = vpop.f32.mrb[0].mxu0
      %v2220 = vpop.f32.mrb[0].mxu0
      %v2221 = vadd.f32 %v451, %v2220
      %v2222 = vpop.f32.mrb[0].mxu0
      %2223 = vdwg.mxu0
      %2224 = vrot.lane.b32.xlu0 %v447, 104
      %v2225 = vpop.permute.xlu0 %2224
      %2226 = vrot.lane.b32.xlu0 %v447, 72
      %v2227 = vpop.permute.xlu0 %2226
      %v2229 = vsel %vm465, %v2225, 0
      %v2232 = vsel %vm465, %v2227, 0
      %2234 = vmatprep.subr.bf16.mxu0 0
      %2235 = vmatpush1.bf16.xpose.msra.mxu0 %v2232
      %2236 = vmatprep.subr.bf16.mxu0 0
      %2237 = vmatpush1.bf16.xpose.msra.mxu0 0
      %2238 = vmatprep.subr.bf16.mxu0 0
      %2239 = vmatpush1.bf16.xpose.msra.mxu0 0
      %2240 = vmatprep.subr.bf16.mxu0 0
      %2241 = vmatpush1.bf16.xpose.msra.mxu0 0
      %2242 = vmatprep.subr.bf16.mxu0 0
      %2243 = vmatpush1.bf16.xpose.msra.mxu0 0
      %2244 = vmatprep.subr.bf16.mxu0 0
      %2245 = vmatpush1.bf16.xpose.msra.mxu0 0
      %2246 = vmatprep.subr.bf16.mxu0 0
      %2247 = vmatpush1.bf16.xpose.msra.mxu0 0
      %2248 = vmatprep.subr.bf16.mxu0 0
      %2249 = vmatpush1.bf16.xpose.msra.mxu0 0
      %2250 = vmatprep.subr.bf16.mxu0 0
      %2251 = vmatpush1.bf16.xpose.msra.mxu0 0
      %2252 = vmatprep.subr.bf16.mxu0 0
      %2253 = vmatpush1.bf16.xpose.msra.mxu0 0
      %2254 = vmatprep.subr.bf16.mxu0 0
      %2255 = vmatpush1.bf16.xpose.msra.mxu0 0
      %2256 = vmatprep.subr.bf16.mxu0 0
      %2257 = vmatpush1.bf16.xpose.msra.mxu0 0
      %2258 = vmatprep.subr.bf16.mxu0 0
      %2259 = vmatpush1.bf16.xpose.msra.mxu0 0
      %2260 = vmatprep.subr.bf16.mxu0 0
      %2261 = vmatpush1.bf16.xpose.msra.mxu0 0
      %2262 = vmatprep.subr.bf16.mxu0 0
      %2263 = vmatpush1.bf16.xpose.msra.mxu0 0
      %2264 = vmatprep.subr.bf16.mxu0 0
      %2265 = vmatpush1.bf16.xpose.msra.mxu0 0
      %2266 = vmatprep.mubr.bf16.mxu0 0
      %2267 = vmatmul.mubr.bf16.gmra.mrb[0].mxu0 %v2229
      %v2268 = vpop.f32.mrb[0].mxu0
      %v2269 = vadd.f32 %v452, %v2268
      %v2270 = vpop.f32.mrb[0].mxu0
      %v2271 = vpop.f32.mrb[0].mxu0
      %v2272 = vadd.f32 %v453, %v2271
      %v2273 = vpop.f32.mrb[0].mxu0
      %2274 = vdwg.mxu0
      %2275 = vrot.lane.b32.xlu0 %v448, 104
      %v2276 = vpop.permute.xlu0 %2275
      %2277 = vrot.lane.b32.xlu0 %v448, 72
      %v2278 = vpop.permute.xlu0 %2277
      %v2280 = vsel %vm465, %v2276, 0
      %v2283 = vsel %vm465, %v2278, 0
      %2285 = vmatprep.subr.bf16.mxu0 0
      %2286 = vmatpush1.bf16.xpose.msra.mxu0 %v2283
      %2287 = vmatprep.subr.bf16.mxu0 0
      %2288 = vmatpush1.bf16.xpose.msra.mxu0 0
      %2289 = vmatprep.subr.bf16.mxu0 0
      %2290 = vmatpush1.bf16.xpose.msra.mxu0 0
      %2291 = vmatprep.subr.bf16.mxu0 0
      %2292 = vmatpush1.bf16.xpose.msra.mxu0 0
      %2293 = vmatprep.subr.bf16.mxu0 0
      %2294 = vmatpush1.bf16.xpose.msra.mxu0 0
      %2295 = vmatprep.subr.bf16.mxu0 0
      %2296 = vmatpush1.bf16.xpose.msra.mxu0 0
      %2297 = vmatprep.subr.bf16.mxu0 0
      %2298 = vmatpush1.bf16.xpose.msra.mxu0 0
      %2299 = vmatprep.subr.bf16.mxu0 0
      %2300 = vmatpush1.bf16.xpose.msra.mxu0 0
      %2301 = vmatprep.subr.bf16.mxu0 0
      %2302 = vmatpush1.bf16.xpose.msra.mxu0 0
      %2303 = vmatprep.subr.bf16.mxu0 0
      %2304 = vmatpush1.bf16.xpose.msra.mxu0 0
      %2305 = vmatprep.subr.bf16.mxu0 0
      %2306 = vmatpush1.bf16.xpose.msra.mxu0 0
      %2307 = vmatprep.subr.bf16.mxu0 0
      %2308 = vmatpush1.bf16.xpose.msra.mxu0 0
      %2309 = vmatprep.subr.bf16.mxu0 0
      %2310 = vmatpush1.bf16.xpose.msra.mxu0 0
      %2311 = vmatprep.subr.bf16.mxu0 0
      %2312 = vmatpush1.bf16.xpose.msra.mxu0 0
      %2313 = vmatprep.subr.bf16.mxu0 0
      %2314 = vmatpush1.bf16.xpose.msra.mxu0 0
      %2315 = vmatprep.subr.bf16.mxu0 0
      %2316 = vmatpush1.bf16.xpose.msra.mxu0 0
      %2317 = vmatprep.mubr.bf16.mxu0 0
      %2318 = vmatmul.mubr.bf16.gmra.mrb[0].mxu0 %v2280
      %v2319 = vpop.f32.mrb[0].mxu0
      %v2320 = vadd.f32 %v454, %v2319
      %v2321 = vpop.f32.mrb[0].mxu0
      %v2322 = vpop.f32.mrb[0].mxu0
      %v2323 = vadd.f32 %v455, %v2322
      %v2324 = vpop.f32.mrb[0].mxu0
      %2325 = vdwg.mxu0
      %2326 = vrot.lane.b32.xlu0 %v449, 104
      %v2327 = vpop.permute.xlu0 %2326
      %2328 = vrot.lane.b32.xlu0 %v449, 72
      %v2329 = vpop.permute.xlu0 %2328
      %v2331 = vsel %vm465, %v2327, 0
      %v2334 = vsel %vm465, %v2329, 0
      %2336 = vmatprep.subr.bf16.mxu0 0
      %2337 = vmatpush1.bf16.xpose.msra.mxu0 %v2334
      %2338 = vmatprep.subr.bf16.mxu0 0
      %2339 = vmatpush1.bf16.xpose.msra.mxu0 0
      %2340 = vmatprep.subr.bf16.mxu0 0
      %2341 = vmatpush1.bf16.xpose.msra.mxu0 0
      %2342 = vmatprep.subr.bf16.mxu0 0
      %2343 = vmatpush1.bf16.xpose.msra.mxu0 0
      %2344 = vmatprep.subr.bf16.mxu0 0
      %2345 = vmatpush1.bf16.xpose.msra.mxu0 0
      %2346 = vmatprep.subr.bf16.mxu0 0
      %2347 = vmatpush1.bf16.xpose.msra.mxu0 0
      %2348 = vmatprep.subr.bf16.mxu0 0
      %2349 = vmatpush1.bf16.xpose.msra.mxu0 0
      %2350 = vmatprep.subr.bf16.mxu0 0
      %2351 = vmatpush1.bf16.xpose.msra.mxu0 0
      %2352 = vmatprep.subr.bf16.mxu0 0
      %2353 = vmatpush1.bf16.xpose.msra.mxu0 0
      %2354 = vmatprep.subr.bf16.mxu0 0
      %2355 = vmatpush1.bf16.xpose.msra.mxu0 0
      %2356 = vmatprep.subr.bf16.mxu0 0
      %2357 = vmatpush1.bf16.xpose.msra.mxu0 0
      %2358 = vmatprep.subr.bf16.mxu0 0
      %2359 = vmatpush1.bf16.xpose.msra.mxu0 0
      %2360 = vmatprep.subr.bf16.mxu0 0
      %2361 = vmatpush1.bf16.xpose.msra.mxu0 0
      %2362 = vmatprep.subr.bf16.mxu0 0
      %2363 = vmatpush1.bf16.xpose.msra.mxu0 0
      %2364 = vmatprep.subr.bf16.mxu0 0
      %2365 = vmatpush1.bf16.xpose.msra.mxu0 0
      %2366 = vmatprep.subr.bf16.mxu0 0
      %2367 = vmatpush1.bf16.xpose.msra.mxu0 0
      %2368 = vmatprep.mubr.bf16.mxu0 0
      %2369 = vmatmul.mubr.bf16.gmra.mrb[0].mxu0 %v2331
      %v2370 = vpop.f32.mrb[0].mxu0
      %v2371 = vadd.f32 %v456, %v2370
      %v2372 = vpop.f32.mrb[0].mxu0
      %v2373 = vpop.f32.mrb[0].mxu0
      %v2374 = vadd.f32 %v457, %v2373
      %v2375 = vpop.f32.mrb[0].mxu0
      %2376 = vdwg.mxu0
      %v2377 = vsel %vm663, %v2218, -inf
      %2378 = vmax.xlane.f32.xlu0 %v2377
      %v2379 = vpop.xlane.xlu0 %2378
      %v2380 = vsel %vm663, %v2221, -inf
      %2381 = vmax.xlane.f32.xlu0 %v2380
      %v2382 = vpop.xlane.xlu0 %2381
      %v2383 = vsel %vm663, %v2269, -inf
      %2384 = vmax.xlane.f32.xlu0 %v2383
      %v2385 = vpop.xlane.xlu0 %2384
      %v2386 = vsel %vm663, %v2272, -inf
      %2387 = vmax.xlane.f32.xlu0 %v2386
      %v2388 = vpop.xlane.xlu0 %2387
      %v2389 = vsel %vm663, %v2320, -inf
      %2390 = vmax.xlane.f32.xlu0 %v2389
      %v2391 = vpop.xlane.xlu0 %2390
      %v2392 = vsel %vm663, %v2323, -inf
      %2393 = vmax.xlane.f32.xlu0 %v2392
      %v2394 = vpop.xlane.xlu0 %2393
      %v2395 = vsel %vm663, %v2371, -inf
      %2396 = vmax.xlane.f32.xlu0 %v2395
      %v2397 = vpop.xlane.xlu0 %2396
      %v2398 = vsel %vm663, %v2374, -inf
      %2399 = vmax.xlane.f32.xlu0 %v2398
      %v2400 = vpop.xlane.xlu0 %2399
      %v2401 = vsub.f32 %v2218, %v2379
      %v2402 = vsub.f32 %v2221, %v2382
      %v2403 = vsub.f32 %v2269, %v2385
      %v2404 = vsub.f32 %v2272, %v2388
      %v2405 = vsub.f32 %v2320, %v2391
      %v2406 = vsub.f32 %v2323, %v2394
      %v2407 = vsub.f32 %v2371, %v2397
      %v2408 = vsub.f32 %v2374, %v2400
      %v2409 = vmul.f32 %v2401, 1.442695
      %v2410 = vpow.pop %v2409
      %v2411 = vmul.f32 %v2402, 1.442695
      %v2412 = vpow.pop %v2411
      %v2413 = vmul.f32 %v2403, 1.442695
      %v2414 = vpow.pop %v2413
      %v2415 = vmul.f32 %v2404, 1.442695
      %v2416 = vpow.pop %v2415
      %v2417 = vmul.f32 %v2405, 1.442695
      %v2418 = vpow.pop %v2417
      %v2419 = vmul.f32 %v2406, 1.442695
      %v2420 = vpow.pop %v2419
      %v2421 = vmul.f32 %v2407, 1.442695
      %v2422 = vpow.pop %v2421
      %v2423 = vmul.f32 %v2408, 1.442695
      %v2424 = vpow.pop %v2423
      %v2425 = vsel %vm663, %v2410, 0.0
      %2426 = vadd.xlane.f32.xlu0 %v2425
      %v2427 = vpop.xlane.xlu0 %2426
      %v2428 = vsel %vm663, %v2412, 0.0
      %2429 = vadd.xlane.f32.xlu0 %v2428
      %v2430 = vpop.xlane.xlu0 %2429
      %v2431 = vsel %vm663, %v2414, 0.0
      %2432 = vadd.xlane.f32.xlu0 %v2431
      %v2433 = vpop.xlane.xlu0 %2432
      %v2434 = vsel %vm663, %v2416, 0.0
      %2435 = vadd.xlane.f32.xlu0 %v2434
      %v2436 = vpop.xlane.xlu0 %2435
      %v2437 = vsel %vm663, %v2418, 0.0
      %2438 = vadd.xlane.f32.xlu0 %v2437
      %v2439 = vpop.xlane.xlu0 %2438
      %v2440 = vsel %vm663, %v2420, 0.0
      %2441 = vadd.xlane.f32.xlu0 %v2440
      %v2442 = vpop.xlane.xlu0 %2441
      %v2443 = vsel %vm663, %v2422, 0.0
      %2444 = vadd.xlane.f32.xlu0 %v2443
      %v2445 = vpop.xlane.xlu0 %2444
      %v2446 = vsel %vm663, %v2424, 0.0
      %2447 = vadd.xlane.f32.xlu0 %v2446
      %v2448 = vpop.xlane.xlu0 %2447
      %v2449 = vrcp.pop %v2427
      %v2450 = vrcp.pop %v2430
      %v2451 = vrcp.pop %v2433
      %v2452 = vrcp.pop %v2436
      %v2453 = vrcp.pop %v2439
      %v2454 = vrcp.pop %v2442
      %v2455 = vrcp.pop %v2445
      %v2456 = vrcp.pop %v2448
      %v2457 = vmul.f32 %v2410, %v2449
      %v2458 = vmul.f32 %v2412, %v2450
      %v2459 = vmul.f32 %v2414, %v2451
      %v2460 = vmul.f32 %v2416, %v2452
      %v2461 = vmul.f32 %v2418, %v2453
      %v2462 = vmul.f32 %v2420, %v2454
      %v2463 = vmul.f32 %v2422, %v2455
      %v2464 = vmul.f32 %v2424, %v2456
      %v2465 = vpack.c.bf16 %v2458, %v2457
      %v2466 = vpack.c.bf16 %v2460, %v2459
      %v2467 = vpack.c.bf16 %v2462, %v2461
      %v2468 = vpack.c.bf16 %v2464, %v2463
      %2469 = vrot.lane.b32.xlu0 %v446, 40
      %v2470 = vpop.permute.xlu0 %2469
      %v2473 = vsel %vm663, %v2465, 0
      %2475 = vmatprep.subr.bf16.mxu0 0
      %2476 = vmatpush1.bf16.msra.mxu0 %v2470
      %2477 = vmatprep.subr.bf16.mxu0 0
      %2478 = vmatpush1.bf16.msra.mxu0 0
      %2479 = vmatprep.subr.bf16.mxu0 0
      %2480 = vmatpush1.bf16.msra.mxu0 0
      %2481 = vmatprep.subr.bf16.mxu0 0
      %2482 = vmatpush1.bf16.msra.mxu0 0
      %2483 = vmatprep.subr.bf16.mxu0 0
      %2484 = vmatpush1.bf16.msra.mxu0 0
      %2485 = vmatprep.subr.bf16.mxu0 0
      %2486 = vmatpush1.bf16.msra.mxu0 0
      %2487 = vmatprep.subr.bf16.mxu0 0
      %2488 = vmatpush1.bf16.msra.mxu0 0
      %2489 = vmatprep.subr.bf16.mxu0 0
      %2490 = vmatpush1.bf16.msra.mxu0 0
      %2491 = vmatprep.subr.bf16.mxu0 0
      %2492 = vmatpush1.bf16.msra.mxu0 0
      %2493 = vmatprep.subr.bf16.mxu0 0
      %2494 = vmatpush1.bf16.msra.mxu0 0
      %2495 = vmatprep.subr.bf16.mxu0 0
      %2496 = vmatpush1.bf16.msra.mxu0 0
      %2497 = vmatprep.subr.bf16.mxu0 0
      %2498 = vmatpush1.bf16.msra.mxu0 0
      %2499 = vmatprep.subr.bf16.mxu0 0
      %2500 = vmatpush1.bf16.msra.mxu0 0
      %2501 = vmatprep.subr.bf16.mxu0 0
      %2502 = vmatpush1.bf16.msra.mxu0 0
      %2503 = vmatprep.subr.bf16.mxu0 0
      %2504 = vmatpush1.bf16.msra.mxu0 0
      %2505 = vmatprep.subr.bf16.mxu0 0
      %2506 = vmatpush1.bf16.msra.mxu0 0
      %2507 = vmatprep.mubr.bf16.mxu0 0
      %2508 = vmatmul.mubr.bf16.gmra.mrb[0].mxu0 %v2473
      %v2509 = vpop.f32.mrb[0].mxu0
      %v2510 = vadd.f32 0.0, %v2509
      %v2511 = vpop.f32.mrb[0].mxu0
      %v2512 = vpop.f32.mrb[0].mxu0
      %v2513 = vadd.f32 0.0, %v2512
      %v2514 = vpop.f32.mrb[0].mxu0
      %2515 = vdwg.mxu0
      %2516 = vrot.lane.b32.xlu0 %v447, 40
      %v2517 = vpop.permute.xlu0 %2516
      %v2520 = vsel %vm663, %v2466, 0
      %2522 = vmatprep.subr.bf16.mxu0 0
      %2523 = vmatpush1.bf16.msra.mxu0 %v2517
      %2524 = vmatprep.subr.bf16.mxu0 0
      %2525 = vmatpush1.bf16.msra.mxu0 0
      %2526 = vmatprep.subr.bf16.mxu0 0
      %2527 = vmatpush1.bf16.msra.mxu0 0
      %2528 = vmatprep.subr.bf16.mxu0 0
      %2529 = vmatpush1.bf16.msra.mxu0 0
      %2530 = vmatprep.subr.bf16.mxu0 0
      %2531 = vmatpush1.bf16.msra.mxu0 0
      %2532 = vmatprep.subr.bf16.mxu0 0
      %2533 = vmatpush1.bf16.msra.mxu0 0
      %2534 = vmatprep.subr.bf16.mxu0 0
      %2535 = vmatpush1.bf16.msra.mxu0 0
      %2536 = vmatprep.subr.bf16.mxu0 0
      %2537 = vmatpush1.bf16.msra.mxu0 0
      %2538 = vmatprep.subr.bf16.mxu0 0
      %2539 = vmatpush1.bf16.msra.mxu0 0
      %2540 = vmatprep.subr.bf16.mxu0 0
      %2541 = vmatpush1.bf16.msra.mxu0 0
      %2542 = vmatprep.subr.bf16.mxu0 0
      %2543 = vmatpush1.bf16.msra.mxu0 0
      %2544 = vmatprep.subr.bf16.mxu0 0
      %2545 = vmatpush1.bf16.msra.mxu0 0
      %2546 = vmatprep.subr.bf16.mxu0 0
      %2547 = vmatpush1.bf16.msra.mxu0 0
      %2548 = vmatprep.subr.bf16.mxu0 0
      %2549 = vmatpush1.bf16.msra.mxu0 0
      %2550 = vmatprep.subr.bf16.mxu0 0
      %2551 = vmatpush1.bf16.msra.mxu0 0
      %2552 = vmatprep.subr.bf16.mxu0 0
      %2553 = vmatpush1.bf16.msra.mxu0 0
      %2554 = vmatprep.mubr.bf16.mxu0 0
      %2555 = vmatmul.mubr.bf16.gmra.mrb[0].mxu0 %v2520
      %v2556 = vpop.f32.mrb[0].mxu0
      %v2557 = vadd.f32 0.0, %v2556
      %v2558 = vpop.f32.mrb[0].mxu0
      %v2559 = vpop.f32.mrb[0].mxu0
      %v2560 = vadd.f32 0.0, %v2559
      %v2561 = vpop.f32.mrb[0].mxu0
      %2562 = vdwg.mxu0
      %2563 = vrot.lane.b32.xlu0 %v448, 40
      %v2564 = vpop.permute.xlu0 %2563
      %v2567 = vsel %vm663, %v2467, 0
      %2569 = vmatprep.subr.bf16.mxu0 0
      %2570 = vmatpush1.bf16.msra.mxu0 %v2564
      %2571 = vmatprep.subr.bf16.mxu0 0
      %2572 = vmatpush1.bf16.msra.mxu0 0
      %2573 = vmatprep.subr.bf16.mxu0 0
      %2574 = vmatpush1.bf16.msra.mxu0 0
      %2575 = vmatprep.subr.bf16.mxu0 0
      %2576 = vmatpush1.bf16.msra.mxu0 0
      %2577 = vmatprep.subr.bf16.mxu0 0
      %2578 = vmatpush1.bf16.msra.mxu0 0
      %2579 = vmatprep.subr.bf16.mxu0 0
      %2580 = vmatpush1.bf16.msra.mxu0 0
      %2581 = vmatprep.subr.bf16.mxu0 0
      %2582 = vmatpush1.bf16.msra.mxu0 0
      %2583 = vmatprep.subr.bf16.mxu0 0
      %2584 = vmatpush1.bf16.msra.mxu0 0
      %2585 = vmatprep.subr.bf16.mxu0 0
      %2586 = vmatpush1.bf16.msra.mxu0 0
      %2587 = vmatprep.subr.bf16.mxu0 0
      %2588 = vmatpush1.bf16.msra.mxu0 0
      %2589 = vmatprep.subr.bf16.mxu0 0
      %2590 = vmatpush1.bf16.msra.mxu0 0
      %2591 = vmatprep.subr.bf16.mxu0 0
      %2592 = vmatpush1.bf16.msra.mxu0 0
      %2593 = vmatprep.subr.bf16.mxu0 0
      %2594 = vmatpush1.bf16.msra.mxu0 0
      %2595 = vmatprep.subr.bf16.mxu0 0
      %2596 = vmatpush1.bf16.msra.mxu0 0
      %2597 = vmatprep.subr.bf16.mxu0 0
      %2598 = vmatpush1.bf16.msra.mxu0 0
      %2599 = vmatprep.subr.bf16.mxu0 0
      %2600 = vmatpush1.bf16.msra.mxu0 0
      %2601 = vmatprep.mubr.bf16.mxu0 0
      %2602 = vmatmul.mubr.bf16.gmra.mrb[0].mxu0 %v2567
      %v2603 = vpop.f32.mrb[0].mxu0
      %v2604 = vadd.f32 0.0, %v2603
      %v2605 = vpop.f32.mrb[0].mxu0
      %v2606 = vpop.f32.mrb[0].mxu0
      %v2607 = vadd.f32 0.0, %v2606
      %v2608 = vpop.f32.mrb[0].mxu0
      %2609 = vdwg.mxu0
      %2610 = vrot.lane.b32.xlu0 %v449, 40
      %v2611 = vpop.permute.xlu0 %2610
      %v2614 = vsel %vm663, %v2468, 0
      %2616 = vmatprep.subr.bf16.mxu0 0
      %2617 = vmatpush1.bf16.msra.mxu0 %v2611
      %2618 = vmatprep.subr.bf16.mxu0 0
      %2619 = vmatpush1.bf16.msra.mxu0 0
      %2620 = vmatprep.subr.bf16.mxu0 0
      %2621 = vmatpush1.bf16.msra.mxu0 0
      %2622 = vmatprep.subr.bf16.mxu0 0
      %2623 = vmatpush1.bf16.msra.mxu0 0
      %2624 = vmatprep.subr.bf16.mxu0 0
      %2625 = vmatpush1.bf16.msra.mxu0 0
      %2626 = vmatprep.subr.bf16.mxu0 0
      %2627 = vmatpush1.bf16.msra.mxu0 0
      %2628 = vmatprep.subr.bf16.mxu0 0
      %2629 = vmatpush1.bf16.msra.mxu0 0
      %2630 = vmatprep.subr.bf16.mxu0 0
      %2631 = vmatpush1.bf16.msra.mxu0 0
      %2632 = vmatprep.subr.bf16.mxu0 0
      %2633 = vmatpush1.bf16.msra.mxu0 0
      %2634 = vmatprep.subr.bf16.mxu0 0
      %2635 = vmatpush1.bf16.msra.mxu0 0
      %2636 = vmatprep.subr.bf16.mxu0 0
      %2637 = vmatpush1.bf16.msra.mxu0 0
      %2638 = vmatprep.subr.bf16.mxu0 0
      %2639 = vmatpush1.bf16.msra.mxu0 0
      %2640 = vmatprep.subr.bf16.mxu0 0
      %2641 = vmatpush1.bf16.msra.mxu0 0
      %2642 = vmatprep.subr.bf16.mxu0 0
      %2643 = vmatpush1.bf16.msra.mxu0 0
      %2644 = vmatprep.subr.bf16.mxu0 0
      %2645 = vmatpush1.bf16.msra.mxu0 0
      %2646 = vmatprep.subr.bf16.mxu0 0
      %2647 = vmatpush1.bf16.msra.mxu0 0
      %2648 = vmatprep.mubr.bf16.mxu0 0
      %2649 = vmatmul.mubr.bf16.gmra.mrb[0].mxu0 %v2614
      %v2650 = vpop.f32.mrb[0].mxu0
      %v2651 = vadd.f32 0.0, %v2650
      %v2652 = vpop.f32.mrb[0].mxu0
      %v2653 = vpop.f32.mrb[0].mxu0
      %v2654 = vadd.f32 0.0, %v2653
      %v2655 = vpop.f32.mrb[0].mxu0
      %2656 = vdwg.mxu0
      %v2657 = vpack.c.bf16 %v2513, %v2510
      %v2658 = vpack.c.bf16 %v2560, %v2557
      %v2659 = vpack.c.bf16 %v2607, %v2604
      %v2660 = vpack.c.bf16 %v2654, %v2651
      %v2662 = vsel %vm465, %v2657, 0
      %v2665 = vsel %vm465, %v2658, 0
      %v2668 = vsel %vm465, %v2659, 0
      %v2671 = vsel %vm465, %v2660, 0
      %v2674 = vsel %vm1448, %v461, 0
      %2676 = vmatprep.subr.bf16.mxu0 0
      %2677 = vmatpush1.bf16.msra.mxu0 %v2674
      %2678 = vmatprep.subr.bf16.mxu0 0
      %2679 = vmatpush1.bf16.msra.mxu0 0
      %2680 = vmatprep.subr.bf16.mxu0 0
      %2681 = vmatpush1.bf16.msra.mxu0 0
      %2682 = vmatprep.subr.bf16.mxu0 0
      %2683 = vmatpush1.bf16.msra.mxu0 0
      %2684 = vmatprep.subr.bf16.mxu0 0
      %2685 = vmatpush1.bf16.msra.mxu0 0
      %2686 = vmatprep.subr.bf16.mxu0 0
      %2687 = vmatpush1.bf16.msra.mxu0 0
      %2688 = vmatprep.subr.bf16.mxu0 0
      %2689 = vmatpush1.bf16.msra.mxu0 0
      %2690 = vmatprep.subr.bf16.mxu0 0
      %2691 = vmatpush1.bf16.msra.mxu0 0
      %2692 = vmatprep.subr.bf16.mxu0 0
      %2693 = vmatpush1.bf16.msra.mxu0 0
      %2694 = vmatprep.subr.bf16.mxu0 0
      %2695 = vmatpush1.bf16.msra.mxu0 0
      %2696 = vmatprep.subr.bf16.mxu0 0
      %2697 = vmatpush1.bf16.msra.mxu0 0
      %2698 = vmatprep.subr.bf16.mxu0 0
      %2699 = vmatpush1.bf16.msra.mxu0 0
      %2700 = vmatprep.subr.bf16.mxu0 0
      %2701 = vmatpush1.bf16.msra.mxu0 0
      %2702 = vmatprep.subr.bf16.mxu0 0
      %2703 = vmatpush1.bf16.msra.mxu0 0
      %2704 = vmatprep.subr.bf16.mxu0 0
      %2705 = vmatpush1.bf16.msra.mxu0 0
      %2706 = vmatprep.subr.bf16.mxu0 0
      %2707 = vmatpush1.bf16.msra.mxu0 0
      %2708 = vmatprep.mubr.bf16.mxu0 0
      %2709 = vmatmul.mubr.bf16.gmra.mrb[0].mxu0 %v2662
      %v2710 = vpop.f32.mrb[0].mxu0
      %v2711 = vadd.f32 0.0, %v2710
      %v2712 = vpop.f32.mrb[0].mxu0
      %v2713 = vpop.f32.mrb[0].mxu0
      %v2714 = vadd.f32 0.0, %v2713
      %v2715 = vpop.f32.mrb[0].mxu0
      %2716 = vmatprep.mubr.bf16.mxu0 0
      %2717 = vmatmul.mubr.bf16.gmra.mrb[0].mxu0 %v2665
      %v2718 = vpop.f32.mrb[0].mxu0
      %v2719 = vadd.f32 0.0, %v2718
      %v2720 = vpop.f32.mrb[0].mxu0
      %v2721 = vpop.f32.mrb[0].mxu0
      %v2722 = vadd.f32 0.0, %v2721
      %v2723 = vpop.f32.mrb[0].mxu0
      %2724 = vmatprep.mubr.bf16.mxu0 0
      %2725 = vmatmul.mubr.bf16.gmra.mrb[0].mxu0 %v2668
      %v2726 = vpop.f32.mrb[0].mxu0
      %v2727 = vadd.f32 0.0, %v2726
      %v2728 = vpop.f32.mrb[0].mxu0
      %v2729 = vpop.f32.mrb[0].mxu0
      %v2730 = vadd.f32 0.0, %v2729
      %v2731 = vpop.f32.mrb[0].mxu0
      %2732 = vmatprep.mubr.bf16.mxu0 0
      %2733 = vmatmul.mubr.bf16.gmra.mrb[0].mxu0 %v2671
      %v2734 = vpop.f32.mrb[0].mxu0
      %v2735 = vadd.f32 0.0, %v2734
      %v2736 = vpop.f32.mrb[0].mxu0
      %v2737 = vpop.f32.mrb[0].mxu0
      %v2738 = vadd.f32 0.0, %v2737
      %v2739 = vpop.f32.mrb[0].mxu0
      %2740 = vdwg.mxu0
      %v2741 = vadd.f32 %v2165, %v2711
      %v2742 = vadd.f32 %v2166, %v2714
      %v2743 = vadd.f32 %v2167, %v2719
      %v2744 = vadd.f32 %v2168, %v2722
      %v2745 = vadd.f32 %v2169, %v2727
      %v2746 = vadd.f32 %v2170, %v2730
      %v2747 = vadd.f32 %v2171, %v2735
      %v2748 = vadd.f32 %v2172, %v2738
      %v2749 = vld [vmem:[%s5] sm:$0x1]
      %v2751 = vlaneseq
      %v2752 = vshrl.u32 %v2751, 7
      %v2753 = vsub.s32 0, %v2752
      %v2754 = vrot.slane %v2749, %v2753
      %v2756 = vadd.f32 %v2741, %v2754
      %v2757 = vadd.f32 %v2742, %v2754
      %v2758 = vadd.f32 %v2743, %v2754
      %v2759 = vadd.f32 %v2744, %v2754
      %v2760 = vadd.f32 %v2745, %v2754
      %v2761 = vadd.f32 %v2746, %v2754
      %v2762 = vadd.f32 %v2747, %v2754
      %v2763 = vadd.f32 %v2748, %v2754
      %2764 = vst.msk [vmem:[%s314] sm:$0xff] %vm368, %v2756
      %2765 = vst.msk [vmem:[%s314 + $0x8] sm:$0xff] %vm368, %v2757
      %2766 = vst.msk [vmem:[%s314 + $0x10] sm:$0xff] %vm368, %v2758
      %2767 = vst.msk [vmem:[%s314 + $0x18] sm:$0xff] %vm368, %v2759
      %2768 = vst.msk [vmem:[%s314 + $0x20] sm:$0xff] %vm368, %v2760
      %2769 = vst.msk [vmem:[%s314 + $0x28] sm:$0xff] %vm368, %v2761
      %2770 = vst.msk [vmem:[%s314 + $0x30] sm:$0xff] %vm368, %v2762
      %2771 = vst.msk [vmem:[%s314 + $0x38] sm:$0xff] %vm368, %v2763
      %s2772 = smul.u32 8, %s22
      %p2773 = scmp.lt.s32.totalorder %s21, 1
      %s2774 = scalar_select %p2773, %s21, 1
      %p2775 = scmp.lt.s32.totalorder %s2772, 7
      %s2776 = scalar_select %p2775, %s2772, 7
      %s2777 = smul.addr %s2774, 8
      %s2778 = sadd.s32 %s2776, %s2777
      %s2779 = smul.addr %s2778, 8
      %s2780 = scalar_lea.vmem %s6, %s2779
      // Predicated region
      $region45: #{tpu_custom_call.1} parent=43 // pred_check
        %p2781 = pneg %p187
      $region46: #{tpu_custom_call.1} parent=43 // pred_check_branch
        %2783 = sbr.rel (%p2781) target = $region48
      $region47: #{tpu_custom_call.1} parent=43 // pred_region
        %s2784 = smul.u32 8, %s22
      $region48: #{tpu_custom_call.1} parent=43 // pred_fallthru
        _
    $region44: #{tpu_custom_call.1} parent=5 // pred_fallthru
      _
    %p2785 = scmp.le.s32.totalorder 2, %s12
    // Predicated region
    $region49: #{tpu_custom_call.1} parent=5 // pred_check
      %p2786 = pneg %p2785
    $region50: #{tpu_custom_call.1} parent=5 // pred_check_branch
      %2788 = sbr.rel (%p2786) target = $region52
    $region51: #{tpu_custom_call.1} parent=5 // pred_region
      %s2789 = ssub.s32 %s12, 2
      // Predicated region
      $region53: #{tpu_custom_call.1} parent=51 // pred_check
        %p2790 = pneg %p193
      $region54: #{tpu_custom_call.1} parent=51 // pred_check_branch
        %2792 = sbr.rel (%p2790) target = $region56
      $region55: #{tpu_custom_call.1} parent=51 // pred_region
        %s2793 = smul.u32 8, %s24
        %p2794 = scmp.lt.s32.totalorder %s23, 1
        %s2795 = scalar_select %p2794, %s23, 1
        %p2796 = scmp.lt.s32.totalorder %s2793, 7
        %s2797 = scalar_select %p2796, %s2793, 7
        %s2798 = smul.addr %s2795, 8
        %s2799 = sadd.s32 %s2797, %s2798
        %s2800 = smul.addr %s2799, 8
        %s2801 = scalar_lea.vmem %s6, %s2800
      $region56: #{tpu_custom_call.1} parent=51 // pred_fallthru
        _
    $region52: #{tpu_custom_call.1} parent=5 // pred_fallthru
      _
  $region6: #{tpu_custom_call.1} parent=0 // loop_footer
    %s16 = sadd.s32 1, %s12
  $region7: #{tpu_custom_call.1} parent=0 // loop_footer_branch
    %11 = sbr.rel target = $region3
  $region8: #{tpu_custom_call.1} parent=0 // loop_exit
    _

</llo_original>
